<compile_context>
chip_gen: v6e
topology: v6e:2x2x1
jax: 0.10.0
libtpu: 0.0.40
codegen_flags: <defaults>
</compile_context>

<pallas_src>
import jax
import jax.numpy as jnp
from jax.experimental import pallas as pl
from jax.experimental.pallas import tpu as pltpu


TM_AGG = 256        # row tile of A  (multiple of 256: good MXU fill on v6e/v7x)
TK_AGG = 256        # contraction tile of A (multiple of 256)
HPAD = 128          # lane-dense channel width used for all hidden/output dims


def _round_up(n, m):
    return ((n + m - 1) // m) * m


def _pad2(a, rows, cols):
    return jnp.pad(a, ((0, rows - a.shape[0]), (0, cols - a.shape[1])))


# ----------------------------------------------------------------------------
# Pallas kernels
# ----------------------------------------------------------------------------
def gcn_layer1_kernel(a_ref, h_ref, b1_ref, w2_ref, out_ref, acc_ref):
    """acc += A_tile @ H0[k*TK:(k+1)*TK]; finalize: out = relu(acc + b1) @ W2 (bf16).

    a_ref : (TM, TK) bf16       h_ref : (Np, 128) bf16  (VMEM resident)
    b1_ref: (1, 128) f32        w2_ref: (128, 128) bf16
    out   : (TM, 128) bf16      acc   : (TM, 128) f32 scratch
    """
    k = pl.program_id(1)

    @pl.when(k == 0)
    def _():
        acc_ref[...] = jnp.zeros_like(acc_ref)

    kk = pl.multiple_of(k * TK_AGG, TK_AGG)
    acc_ref[...] += jnp.dot(a_ref[...], h_ref[pl.ds(kk, TK_AGG), :],
                            preferred_element_type=jnp.float32)

    @pl.when(k == pl.num_programs(1) - 1)
    def _():
        h = jnp.maximum(acc_ref[...] + b1_ref[...], 0.0)
        out_ref[...] = jnp.dot(
            h.astype(w2_ref.dtype), w2_ref[...],
            preferred_element_type=jnp.float32
        ).astype(out_ref.dtype)


def gcn_layer2_kernel(a_ref, g_ref, b2_ref, wl1_ref, bl1_ref,
                      mask_ref, wl2_ref, bl2_ref, out_ref, acc_ref):
    """acc += A_tile @ G[k*TK:(k+1)*TK];
    finalize: relu(acc + b2) -> lin1 -> relu -> dropout -> lin2 (all bf16 MXU, f32 acc).
    """
    k = pl.program_id(1)

    @pl.when(k == 0)
    def _():
        acc_ref[...] = jnp.zeros_like(acc_ref)

    kk = pl.multiple_of(k * TK_AGG, TK_AGG)
    acc_ref[...] += jnp.dot(a_ref[...], g_ref[pl.ds(kk, TK_AGG), :],
                            preferred_element_type=jnp.float32)

    @pl.when(k == pl.num_programs(1) - 1)
    def _():
        h = jnp.maximum(acc_ref[...] + b2_ref[...], 0.0)                    # (TM, 128)
        h = jnp.dot(h.astype(wl1_ref.dtype), wl1_ref[...],
                    preferred_element_type=jnp.float32) + bl1_ref[...]      # lin1
        h = jnp.maximum(h, 0.0) * mask_ref[...]                             # relu+dropout
        out_ref[...] = (jnp.dot(h.astype(wl2_ref.dtype), wl2_ref[...],
                                preferred_element_type=jnp.float32)
                        + bl2_ref[...])                                     # lin2 (TM,128)


# ----------------------------------------------------------------------------
# Pallas wrappers
# ----------------------------------------------------------------------------
def _gcn_agg1(a_bf16, h0_bf16, b1_pad, w2_bf16):
    Np = a_bf16.shape[0]
    grid = (Np // TM_AGG, Np // TK_AGG)
    cost = pl.CostEstimate(
        flops=2 * Np * Np * HPAD + 2 * Np * HPAD * HPAD,
        transcendentals=0,
        bytes_accessed=2 * Np * Np + 2 * Np * HPAD * 2 + 2 * HPAD * HPAD)
    return pl.pallas_call(
        gcn_layer1_kernel,
        out_shape=jax.ShapeDtypeStruct((Np, HPAD), jnp.bfloat16),
        grid_spec=pltpu.PrefetchScalarGridSpec(
            num_scalar_prefetch=0,
            grid=grid,
            in_specs=[
                pl.BlockSpec((TM_AGG, TK_AGG), lambda i, k: (i, k)),   # A tile (streamed)
                pl.BlockSpec((Np, HPAD), lambda i, k: (0, 0)),         # H0 (VMEM resident)
                pl.BlockSpec((1, HPAD), lambda i, k: (0, 0)),          # b1
                pl.BlockSpec((HPAD, HPAD), lambda i, k: (0, 0)),       # W2
            ],
            out_specs=pl.BlockSpec((TM_AGG, HPAD), lambda i, k: (i, 0)),
            scratch_shapes=[pltpu.VMEM((TM_AGG, HPAD), jnp.float32)]),
        compiler_params=pltpu.CompilerParams(
            dimension_semantics=("parallel", "arbitrary"),
            vmem_limit_bytes=32 * 1024 * 1024),
        cost_estimate=cost,
    )(a_bf16, h0_bf16, b1_pad, w2_bf16)


def _gcn_agg2(a_bf16, g_bf16, b2_pad, wl1_bf16, bl1_pad, mask, wl2_bf16, bl2_pad):
    Np = a_bf16.shape[0]
    grid = (Np // TM_AGG, Np // TK_AGG)
    cost = pl.CostEstimate(
        flops=2 * Np * Np * HPAD + 4 * Np * HPAD * HPAD,
        transcendentals=0,
        bytes_accessed=2 * Np * Np + 2 * Np * HPAD * 2 + 4 * Np * HPAD * 2
                       + 4 * HPAD * HPAD)
    return pl.pallas_call(
        gcn_layer2_kernel,
        out_shape=jax.ShapeDtypeStruct((Np, HPAD), jnp.float32),
        grid_spec=pltpu.PrefetchScalarGridSpec(
            num_scalar_prefetch=0,
            grid=grid,
            in_specs=[
                pl.BlockSpec((TM_AGG, TK_AGG), lambda i, k: (i, k)),   # A tile (streamed)
                pl.BlockSpec((Np, HPAD), lambda i, k: (0, 0)),         # G (VMEM resident)
                pl.BlockSpec((1, HPAD), lambda i, k: (0, 0)),          # b2
                pl.BlockSpec((HPAD, HPAD), lambda i, k: (0, 0)),       # Wl1 (bf16)
                pl.BlockSpec((1, HPAD), lambda i, k: (0, 0)),          # bl1
                pl.BlockSpec((TM_AGG, HPAD), lambda i, k: (i, 0)),     # dropout mask
                pl.BlockSpec((HPAD, HPAD), lambda i, k: (0, 0)),       # Wl2 (bf16)
                pl.BlockSpec((1, HPAD), lambda i, k: (0, 0)),          # bl2
            ],
            out_specs=pl.BlockSpec((TM_AGG, HPAD), lambda i, k: (i, 0)),
            scratch_shapes=[pltpu.VMEM((TM_AGG, HPAD), jnp.float32)]),
        compiler_params=pltpu.CompilerParams(
            dimension_semantics=("parallel", "arbitrary"),
            vmem_limit_bytes=32 * 1024 * 1024),
        cost_estimate=cost,
    )(a_bf16, g_bf16, b2_pad, wl1_bf16, bl1_pad, mask, wl2_bf16, bl2_pad)


# ----------------------------------------------------------------------------
# Plain-JAX glue
# ----------------------------------------------------------------------------
def pae_forward(edgenet_input, params):
    """PAE edge network (tiny 2->16->1 MLP) in plain JAX; a Pallas call here is
    pure launch/layout overhead.
    # TODO(synk): PAE class definition is not in the provided source; modeled as
    # a 2-layer MLP (2 -> hidden -> 1) with ReLU + sigmoid output."""
    h = jax.nn.relu(edgenet_input @ params["pae_w1"] + params["pae_b1"])
    w = jax.nn.sigmoid(h @ params["pae_w2"] + params["pae_b2"])
    return jnp.squeeze(w, axis=-1)


def build_gcn_adjacency(edge_index, edge_weight, num_nodes, padded_nodes):
    """Dense D^-1/2 (A + I) D^-1/2 (torch_geometric gcn_norm, self-loops), built
    with a single bf16 N^2 materialization (degrees via segment-add in f32,
    D^-1/2 scaling applied to edge weights before scatter)."""
    row, col = edge_index[0], edge_index[1]           # source, target
    loop = jnp.arange(num_nodes, dtype=edge_index.dtype)
    row_f = jnp.concatenate([row, loop])
    col_f = jnp.concatenate([col, loop])
    w_f = jnp.concatenate([edge_weight.astype(jnp.float32),
                           jnp.ones((num_nodes,), jnp.float32)])
    deg = jnp.zeros((num_nodes,), jnp.float32).at[col_f].add(w_f)
    dinv = jnp.where(deg > 0, jax.lax.rsqrt(deg), 0.0)
    w_norm = dinv[col_f] * w_f * dinv[row_f]
    a = jnp.zeros((padded_nodes, padded_nodes), jnp.bfloat16)
    a = a.at[col_f, row_f].add(w_norm.astype(jnp.bfloat16))
    return a


def node_gcn_forward(x, edge_index, edgenet_input, params,
                     dropout_p=0.3, rng_key=None):
    if rng_key is None:
        rng_key = jax.random.PRNGKey(12345)

    # edge weights from PAE
    edge_weight = pae_forward(edgenet_input.astype(jnp.float32), params)

    N = x.shape[0]
    nclass = params["lin2_w"].shape[1]

    # node dim padded to a multiple of the A tile size (zero rows/cols contribute 0)
    tile = max(TM_AGG, TK_AGG)
    Np = _round_up(N, tile)

    # dense normalized adjacency, built directly at padded size in bf16
    a_p = build_gcn_adjacency(edge_index, edge_weight, N, Np)

    # lane-pad all channel dims (nhid, nhid//2, nclass) to 128 so every kernel
    # operand / accumulator / store is 128-lane dense (zero padding is exact)
    w1_p = _pad2(params["conv1_w"], params["conv1_w"].shape[0], HPAD)        # f32
    b1_p = _pad2(params["conv1_b"], 1, HPAD)
    w2_p = _pad2(params["conv2_w"], HPAD, HPAD).astype(jnp.bfloat16)
    b2_p = _pad2(params["conv2_b"], 1, HPAD)
    wl1_p = _pad2(params["lin1_w"], HPAD, HPAD).astype(jnp.bfloat16)
    bl1_p = _pad2(params["lin1_b"], 1, HPAD)
    wl2_p = _pad2(params["lin2_w"], HPAD, HPAD).astype(jnp.bfloat16)
    bl2_p = _pad2(params["lin2_b"], 1, HPAD)

    # Pass 0: H0 = X @ W1 (tiny matmul, left to XLA), bf16 lane-dense output
    x_p = jnp.pad(x.astype(jnp.float32), ((0, Np - N), (0, 0)))
    h0 = jnp.dot(x_p, w1_p).astype(jnp.bfloat16)                             # (Np, 128)

    # dropout keep/scale mask (F.dropout, training=True), generated host-side
    keep = jax.random.uniform(rng_key, (Np, HPAD), jnp.float32) >= dropout_p
    mask = keep.astype(jnp.float32) * jnp.float32(1.0 / (1.0 - dropout_p))

    # Pass 1: G = relu(A @ H0 + b1) @ W2   (layer-2 feature transform fused)
    g = _gcn_agg1(a_p, h0, b1_p, w2_p)
    # Pass 2: out = dropout(relu(relu(A @ G + b2) @ Wl1 + bl1)) @ Wl2 + bl2
    out_pad = _gcn_agg2(a_p, g, b2_p, wl1_p, bl1_p, mask, wl2_p, bl2_p)
    return out_pad[:N, :nclass]


# ----------------------------------------------------------------------------
# Deterministic parameter init (synthetic)
# ----------------------------------------------------------------------------
def init_params(key, nfeat, nhid, nclass, pae_hidden=16, edge_in=2):
    ks = jax.random.split(key, 10)

    def w(k, shape, scale):
        return jax.random.normal(k, shape, jnp.float32) * scale

    return {
        "pae_w1": w(ks[0], (edge_in, pae_hidden), 0.5),
        "pae_b1": jnp.zeros((1, pae_hidden), jnp.float32),
        "pae_w2": w(ks[1], (pae_hidden, 1), 0.5),
        "pae_b2": jnp.zeros((1, 1), jnp.float32),
        "conv1_w": w(ks[2], (nfeat, nhid), 1.0 / jnp.sqrt(nfeat)),
        "conv1_b": jnp.zeros((1, nhid), jnp.float32),
        "conv2_w": w(ks[3], (nhid, nhid), 1.0 / jnp.sqrt(nhid)),
        "conv2_b": jnp.zeros((1, nhid), jnp.float32),
        "lin1_w": w(ks[4], (nhid, nhid // 2), 1.0 / jnp.sqrt(nhid)),
        "lin1_b": w(ks[5], (1, nhid // 2), 0.01),
        "lin2_w": w(ks[6], (nhid // 2, nclass), 1.0 / jnp.sqrt(nhid // 2)),
        "lin2_b": w(ks[7], (1, nclass), 0.01),
    }


if __name__ == "__main__":
    # small shapes consistent with the module; N padded to 512 -> 2x2 aggregation grid
    N, nfeat, nhid, nclass = 300, 64, 32, 4
    E = 800
    dropout = 0.3

    key = jax.random.PRNGKey(0)
    k_x, k_src, k_dst, k_e, k_p, k_d = jax.random.split(key, 6)

    x = jax.random.normal(k_x, (N, nfeat), jnp.float32)
    src = jax.random.randint(k_src, (E,), 0, N, jnp.int32)
    dst = jax.random.randint(k_dst, (E,), 0, N, jnp.int32)
    edge_index = jnp.stack([src, dst], axis=0)                    # (2, E)
    edgenet_input = jax.random.normal(k_e, (E, 2), jnp.float32)   # PAE input_dim = 2

    params = init_params(k_p, nfeat, nhid, nclass)

    out = node_gcn_forward(x, edge_index, edgenet_input, params,
                           dropout_p=dropout, rng_key=k_d)
    out = jax.block_until_ready(out)
    assert out.shape == (N, nclass)
    assert bool(jnp.all(jnp.isfinite(out)))
    print("KERNEL_OK")
</pallas_src>

<mosaic_0001>
module attributes {stable_mosaic.version = 11 : i64} {
  func.func @gcn_layer1_kernel(%arg0: i32, %arg1: i32, %arg2: memref<256x256xbf16, #tpu.memory_space<vmem>>, %arg3: memref<512x128xbf16, #tpu.memory_space<vmem>>, %arg4: memref<1x128xf32, #tpu.memory_space<vmem>>, %arg5: memref<128x128xbf16, #tpu.memory_space<vmem>>, %arg6: memref<256x128xbf16, #tpu.memory_space<vmem>>, %arg7: memref<256x128xf32, #tpu.memory_space<vmem>>) attributes {dimension_semantics = [#tpu.dimension_semantics<parallel>, #tpu.dimension_semantics<arbitrary>], iteration_bounds = array<i64: 2, 2>, scalar_prefetch = 0 : i64, scratch_operands = 1 : i64, tpu.core_type = #tpu.core_type<tc>, window_params = [{transform_indices = @transform_0, window_bounds = array<i64: 256, 256>}, {pipeline_mode = #tpu.pipeline_mode<synchronous>, transform_indices = @transform_1, window_bounds = array<i64: 512, 128>}, {pipeline_mode = #tpu.pipeline_mode<synchronous>, transform_indices = @transform_2, window_bounds = array<i64: 1, 128>}, {pipeline_mode = #tpu.pipeline_mode<synchronous>, transform_indices = @transform_3, window_bounds = array<i64: 128, 128>}, {transform_indices = @transform_4, window_bounds = array<i64: 256, 128>}]} {
    %c0_i32 = arith.constant 0 : i32
    %0 = arith.cmpi eq, %arg1, %c0_i32 : i32
    %1 = arith.extui %0 : i1 to i32
    %c0_i32_0 = arith.constant 0 : i32
    %2 = arith.cmpi ne, %1, %c0_i32_0 : i32
    scf.if %2 {
      %cst_8 = arith.constant 0.000000e+00 : f32
      %15 = vector.broadcast %cst_8 : f32 to vector<256x128xf32>
      %c0_9 = arith.constant 0 : index
      %c0_10 = arith.constant 0 : index
      %16 = vector.load %arg7[%c0_9, %c0_10] : memref<256x128xf32, #tpu.memory_space<vmem>>, vector<256x128xf32>
      tpu.vector_store %arg7[%c0_9, %c0_10], %15 {strides = array<i32>} : memref<256x128xf32, #tpu.memory_space<vmem>>, vector<256x128xf32>,
    } else {
    }
    %c256_i32 = arith.constant 256 : i32
    %3 = arith.muli %arg1, %c256_i32 : i32
    %4 = tpu.assume_multiple %3, 256 : i32
    %c0 = arith.constant 0 : index
    %c0_1 = arith.constant 0 : index
    %5 = vector.load %arg7[%c0, %c0_1] : memref<256x128xf32, #tpu.memory_space<vmem>>, vector<256x128xf32>
    %c0_2 = arith.constant 0 : index
    %c0_3 = arith.constant 0 : index
    %6 = vector.load %arg2[%c0_2, %c0_3] : memref<256x256xbf16, #tpu.memory_space<vmem>>, vector<256x256xbf16>
    %7 = arith.index_cast %4 : i32 to index
    %c0_4 = arith.constant 0 : index
    %8 = vector.load %arg3[%7, %c0_4] : memref<512x128xbf16, #tpu.memory_space<vmem>>, vector<256x128xbf16>
    %cst = arith.constant dense<0.000000e+00> : vector<256x128xf32>
    %9 = tpu.matmul %6, %8, %cst {dimension_numbers = #tpu.dot_dimension_numbers<[1], [0], [0], [1], [0, 0, 1, 1], [], []>} : vector<256x256xbf16>, vector<256x128xbf16>, vector<256x128xf32> -> vector<256x128xf32>
    %10 = arith.addf %5, %9 : vector<256x128xf32>
    %c0_5 = arith.constant 0 : index
    %c0_6 = arith.constant 0 : index
    %11 = vector.load %arg7[%c0_5, %c0_6] : memref<256x128xf32, #tpu.memory_space<vmem>>, vector<256x128xf32>
    tpu.vector_store %arg7[%c0_5, %c0_6], %10 {strides = array<i32>} : memref<256x128xf32, #tpu.memory_space<vmem>>, vector<256x128xf32>,
    %c1_i32 = arith.constant 1 : i32
    %12 = arith.cmpi eq, %arg1, %c1_i32 : i32
    %13 = arith.extui %12 : i1 to i32
    %c0_i32_7 = arith.constant 0 : i32
    %14 = arith.cmpi ne, %13, %c0_i32_7 : i32
    scf.if %14 {
      %c0_8 = arith.constant 0 : index
      %c0_9 = arith.constant 0 : index
      %15 = vector.load %arg7[%c0_8, %c0_9] : memref<256x128xf32, #tpu.memory_space<vmem>>, vector<256x128xf32>
      %c0_10 = arith.constant 0 : index
      %c0_11 = arith.constant 0 : index
      %16 = vector.load %arg4[%c0_10, %c0_11] : memref<1x128xf32, #tpu.memory_space<vmem>>, vector<1x128xf32>
      %17 = vector.broadcast %16 : vector<1x128xf32> to vector<256x128xf32>
      %18 = arith.addf %15, %17 : vector<256x128xf32>
      %cst_12 = arith.constant 0.000000e+00 : f32
      %19 = vector.broadcast %cst_12 : f32 to vector<256x128xf32>
      %20 = arith.maximumf %18, %19 : vector<256x128xf32>
      %21 = arith.truncf %20 : vector<256x128xf32> to vector<256x128xbf16>
      %c0_13 = arith.constant 0 : index
      %c0_14 = arith.constant 0 : index
      %22 = vector.load %arg5[%c0_13, %c0_14] : memref<128x128xbf16, #tpu.memory_space<vmem>>, vector<128x128xbf16>
      %cst_15 = arith.constant dense<0.000000e+00> : vector<256x128xf32>
      %23 = tpu.matmul %21, %22, %cst_15 {dimension_numbers = #tpu.dot_dimension_numbers<[1], [0], [0], [1], [0, 0, 1, 1], [], []>} : vector<256x128xbf16>, vector<128x128xbf16>, vector<256x128xf32> -> vector<256x128xf32>
      %24 = arith.truncf %23 : vector<256x128xf32> to vector<256x128xbf16>
      %c0_16 = arith.constant 0 : index
      %c0_17 = arith.constant 0 : index
      %25 = vector.load %arg6[%c0_16, %c0_17] : memref<256x128xbf16, #tpu.memory_space<vmem>>, vector<256x128xbf16>
      tpu.vector_store %arg6[%c0_16, %c0_17], %24 {strides = array<i32>} : memref<256x128xbf16, #tpu.memory_space<vmem>>, vector<256x128xbf16>,
    } else {
    }
    return
  }
  func.func @transform_0(%arg0: i32, %arg1: i32) -> (i32, i32) {
    %c0_i32 = arith.constant 0 : i32
    return %arg0, %arg1 : i32, i32
  }
  func.func @transform_1(%arg0: i32, %arg1: i32) -> (i32, i32) {
    %c0_i32 = arith.constant 0 : i32
    %c0_i32_0 = arith.constant 0 : i32
    %c0_i32_1 = arith.constant 0 : i32
    return %c0_i32, %c0_i32_0 : i32, i32
  }
  func.func @transform_2(%arg0: i32, %arg1: i32) -> (i32, i32) {
    %c0_i32 = arith.constant 0 : i32
    %c0_i32_0 = arith.constant 0 : i32
    %c0_i32_1 = arith.constant 0 : i32
    return %c0_i32, %c0_i32_0 : i32, i32
  }
  func.func @transform_3(%arg0: i32, %arg1: i32) -> (i32, i32) {
    %c0_i32 = arith.constant 0 : i32
    %c0_i32_0 = arith.constant 0 : i32
    %c0_i32_1 = arith.constant 0 : i32
    return %c0_i32, %c0_i32_0 : i32, i32
  }
  func.func @transform_4(%arg0: i32, %arg1: i32) -> (i32, i32) {
    %c0_i32 = arith.constant 0 : i32
    %c0_i32_0 = arith.constant 0 : i32
    return %arg0, %c0_i32 : i32, i32
  }
}

</mosaic_0001>

<llo_original>
// kernel: tpu_custom_call.1
$region0: #{tpu_custom_call.1}
  #allocation0 [shape = 'u32[]', space=smem, size = 0x4, offset = 0x4, fixed_abs, tag = 'smem constant byte address 0x4 - core index']
  #allocation1 [shape = 'u32[144,128]{1,0:T(1,128)}', space=vmem, size = 0x12000, scoped, tag = 'internal scratch']
  #allocation2 [shape = 'f32[256,128]{1,0:T(8,128)}', space=vmem, size = 0x20000, scoped, tag = 'scratch operand']
  %s0 = inlined_call_operand.hbm [shape: bf16[512,512], index: 0, kind: input, shape index: {}]
  %s1 = inlined_call_operand.hbm [shape: bf16[512,128], index: 1, kind: input, shape index: {}]
  %s2 = inlined_call_operand.vmem [shape: f32[1,128], index: 2, kind: input, shape index: {}]
  %s3 = inlined_call_operand.hbm [shape: bf16[128,128], index: 3, kind: input, shape index: {}]
  %s4 = inlined_call_operand.hbm [shape: bf16[512,128], index: 4, kind: output, shape index: {}]
  %s5 = sld [smem:[#allocation0]]
  $region69: #{tpu_custom_call.1} parent=0
    _
  %s7 = ssub.s32 1, %s5
  %s8 = scalar_select 0, %s7, %s5
  $region1: #{tpu_custom_call.1} parent=0
    #allocation3 [shape = 'u8[262144]{0}', space=vmem, size = 0x40000, scoped, tag = 'input window, operand 0']
    #allocation4 [shape = 's32[2]{0}', space=sflag, size = 0x8, scoped, tag = 'scoped memory for tpu_custom_call.1']
    #allocation5 [shape = 's32[2]{0}', space=sflag, size = 0x8, scoped, tag = 'scoped memory for tpu_custom_call.1']
    #allocation6 [shape = 'u8[131072]{0}', space=vmem, size = 0x20000, scoped, tag = 'input window, operand 1, single buffered']
    #allocation7 [shape = 's32[1]{0}', space=sflag, size = 0x4, scoped, tag = 'scoped memory for tpu_custom_call.1']
    #allocation8 [shape = 'u8[32768]{0}', space=vmem, size = 0x8000, scoped, tag = 'input window, operand 3, single buffered']
    #allocation9 [shape = 'u8[131072]{0}', space=vmem, size = 0x20000, scoped, tag = 'output window, operand 0']
    %9 = vsyncpa [#allocation4], 0
    %s10 = scalar_lea.sflag [#allocation4], 1
    %11 = vsyncpa %s10, 0
    %12 = vsyncpa [#allocation7], 0
    %13 = vsyncpa [#allocation5], 0
    %s14 = scalar_lea.sflag [#allocation5], 1
    %15 = vsyncpa %s14, 0
    loop: start=0, step=1, limit=6
    $region2: #{tpu_custom_call.1} parent=1 // loop_pre_header
      _
    $region3: #{tpu_custom_call.1} parent=1 // loop_header
      %s17 = sphi 0, %s21
      %p18 = scmp.ge.s32.totalorder %s17, 6
      %s24 = sphi 0, %s36
      %s25 = sphi 0, %s32
      %s26 = sphi 0, %s24
      %s27 = sphi 0, %s25
      %s28 = sphi 0, %s26
      %s29 = sphi 0, %s27
      %s41 = sphi 0, %s43
      %s44 = sphi 0, %s41
      %s45 = sphi 0, %s44
      %s61 = sphi 0, %s45
      %s65 = sphi 0, %s65
      %s67 = sphi 0, %s65
      %s68 = sphi 0, %s67
      %s82 = sphi 0, %s68
      %s86 = sphi 0, %s86
      %s88 = sphi 0, %s86
      %s89 = sphi 0, %s88
      %s103 = sphi 0, %s89
      %s107 = sphi 0, %s107
      %s109 = sphi 0, %s107
      %s110 = sphi 0, %s109
      %s124 = sphi 0, %s110
      %s130 = sphi 0, %s132
      %s133 = sphi 0, %s130
      %s134 = sphi 0, %s133
      %s150 = sphi 0, %s134
    $region4: #{tpu_custom_call.1} parent=1 // loop_header_branch
      %20 = sbr.rel (%p18) target = $region8
    $region5: #{tpu_custom_call.1} parent=1 // loop_body
      %s22 = ssub.s32 %s17, 1
      %s23 = ssub.s32 %s17, 2
      %s30 = sadd.s32 1, %s25
      %p31 = scmp.ge.s32.totalorder %s30, 2
      %s32 = scalar_select %p31, 0, %s30
      %s33 = sadd.s32 1, %s24
      %s34 = scalar_select %p31, %s33, %s24
      %p35 = scmp.ge.s32.totalorder %s34, 2
      %s36 = scalar_select %p35, 0, %s34
      %s37 = ssub.s32 %s24, %s36
      %s38 = ssub.s32 %s25, %s32
      %s39 = sor.u32 %s37, %s38
      %p40 = scmp.eq.s32.totalorder %s39, 0
      %s42 = sadd.s32 %s41, 1
      %s43 = scalar_select %p40, %s41, %s42
      %p46 = pneg %p40
      %p47 = scmp.eq.s32.totalorder %s17, 3
      %p48 = por %p46, %p47
      %p49 = scmp.ne.s32.totalorder %s41, %s44
      %p50 = scmp.eq.s32.totalorder %s17, 0
      %p51 = por %p49, %p50
      %p52 = scmp.ne.s32.totalorder %s41, %s44
      %p53 = scmp.eq.s32.totalorder %s22, 3
      %p54 = por %p52, %p53
      %p55 = scmp.ne.s32.totalorder %s44, %s45
      %p56 = scmp.eq.s32.totalorder %s22, 0
      %p57 = por %p55, %p56
      %p58 = scmp.ne.s32.totalorder %s44, %s45
      %p59 = scmp.eq.s32.totalorder %s23, 3
      %p60 = por %p58, %p59
      %p62 = scmp.ne.s32.totalorder %s45, %s61
      %p63 = scmp.eq.s32.totalorder %s23, 0
      %p64 = por %p62, %p63
      %s66 = sadd.s32 %s65, 1
      %p69 = scmp.eq.s32.totalorder %s17, 3
      %p70 = scmp.ne.s32.totalorder %s65, %s67
      %p71 = scmp.eq.s32.totalorder %s17, 0
      %p72 = por %p70, %p71
      %p73 = scmp.ne.s32.totalorder %s65, %s67
      %p74 = scmp.eq.s32.totalorder %s22, 3
      %p75 = por %p73, %p74
      %p76 = scmp.ne.s32.totalorder %s67, %s68
      %p77 = scmp.eq.s32.totalorder %s22, 0
      %p78 = por %p76, %p77
      %p79 = scmp.ne.s32.totalorder %s67, %s68
      %p80 = scmp.eq.s32.totalorder %s23, 3
      %p81 = por %p79, %p80
      %p83 = scmp.ne.s32.totalorder %s68, %s82
      %p84 = scmp.eq.s32.totalorder %s23, 0
      %p85 = por %p83, %p84
      %s87 = sadd.s32 %s86, 1
      %p90 = scmp.eq.s32.totalorder %s17, 3
      %p91 = scmp.ne.s32.totalorder %s86, %s88
      %p92 = scmp.eq.s32.totalorder %s17, 0
      %p93 = por %p91, %p92
      %p94 = scmp.ne.s32.totalorder %s86, %s88
      %p95 = scmp.eq.s32.totalorder %s22, 3
      %p96 = por %p94, %p95
      %p97 = scmp.ne.s32.totalorder %s88, %s89
      %p98 = scmp.eq.s32.totalorder %s22, 0
      %p99 = por %p97, %p98
      %p100 = scmp.ne.s32.totalorder %s88, %s89
      %p101 = scmp.eq.s32.totalorder %s23, 3
      %p102 = por %p100, %p101
      %p104 = scmp.ne.s32.totalorder %s89, %s103
      %p105 = scmp.eq.s32.totalorder %s23, 0
      %p106 = por %p104, %p105
      %s108 = sadd.s32 %s107, 1
      %p111 = scmp.eq.s32.totalorder %s17, 3
      %p112 = scmp.ne.s32.totalorder %s107, %s109
      %p113 = scmp.eq.s32.totalorder %s17, 0
      %p114 = por %p112, %p113
      %p115 = scmp.ne.s32.totalorder %s107, %s109
      %p116 = scmp.eq.s32.totalorder %s22, 3
      %p117 = por %p115, %p116
      %p118 = scmp.ne.s32.totalorder %s109, %s110
      %p119 = scmp.eq.s32.totalorder %s22, 0
      %p120 = por %p118, %p119
      %p121 = scmp.ne.s32.totalorder %s109, %s110
      %p122 = scmp.eq.s32.totalorder %s23, 3
      %p123 = por %p121, %p122
      %p125 = scmp.ne.s32.totalorder %s110, %s124
      %p126 = scmp.eq.s32.totalorder %s23, 0
      %p127 = por %p125, %p126
      %s128 = ssub.s32 %s24, %s36
      %p129 = scmp.eq.s32.totalorder %s128, 0
      %s131 = sadd.s32 %s130, 1
      %s132 = scalar_select %p129, %s130, %s131
      %p135 = pneg %p129
      %p136 = scmp.eq.s32.totalorder %s17, 3
      %p137 = por %p135, %p136
      %p138 = scmp.ne.s32.totalorder %s130, %s133
      %p139 = scmp.eq.s32.totalorder %s17, 0
      %p140 = por %p138, %p139
      %p141 = scmp.ne.s32.totalorder %s130, %s133
      %p142 = scmp.eq.s32.totalorder %s22, 3
      %p143 = por %p141, %p142
      %p144 = scmp.ne.s32.totalorder %s133, %s134
      %p145 = scmp.eq.s32.totalorder %s22, 0
      %p146 = por %p144, %p145
      %p147 = scmp.ne.s32.totalorder %s133, %s134
      %p148 = scmp.eq.s32.totalorder %s23, 3
      %p149 = por %p147, %p148
      %p151 = scmp.ne.s32.totalorder %s134, %s150
      %p152 = scmp.eq.s32.totalorder %s23, 0
      %p153 = por %p151, %p152
      %p154 = scmp.le.s32.totalorder 1, %s17
      %p155 = scmp.lt.s32.totalorder %s17, 5
      %p156 = pnand %p154, %p155
      %p157 = pneg %p156
      // Predicated region
      $region9: #{tpu_custom_call.1} parent=5 // pred_check
        _
      $region10: #{tpu_custom_call.1} parent=5 // pred_check_branch
        %159 = sbr.rel (%p156) target = $region12
      $region11: #{tpu_custom_call.1} parent=5 // pred_region
        %s160 = ssub.s32 %s17, 1
        // Predicated region
        $region13: #{tpu_custom_call.1} parent=11 // pred_check
          %p161 = pneg %p78
        $region14: #{tpu_custom_call.1} parent=11 // pred_check_branch
          %163 = sbr.rel (%p161) target = $region16
        $region15: #{tpu_custom_call.1} parent=11 // pred_region
          %s165 = ssub.s32 4096, 4096
          %166 = vsyncadd [#allocation7], %s165
          %s167 = sshll.u32 [#allocation6], 4
          %s168 = int_to_ptr.vmem [resolvable:$true] %s167
          %173 = dma.hbm_to_vmem [thread:$0]  %s1, 4096, %s168, [#allocation7], 64, 64, 4
        $region16: #{tpu_custom_call.1} parent=11 // pred_fallthru
          _
        // Predicated region
        $region17: #{tpu_custom_call.1} parent=11 // pred_check
          %p174 = pneg %p99
        $region18: #{tpu_custom_call.1} parent=11 // pred_check_branch
          %176 = sbr.rel (%p174) target = $region20
        $region19: #{tpu_custom_call.1} parent=11 // pred_region
          _
        $region20: #{tpu_custom_call.1} parent=11 // pred_fallthru
          _
        // Predicated region
        $region21: #{tpu_custom_call.1} parent=11 // pred_check
          %p177 = pneg %p120
        $region22: #{tpu_custom_call.1} parent=11 // pred_check_branch
          %179 = sbr.rel (%p177) target = $region24
        $region23: #{tpu_custom_call.1} parent=11 // pred_region
          %s181 = ssub.s32 1024, 1024
          %182 = vsyncadd [#allocation7], %s181
          %s183 = sshll.u32 [#allocation8], 4
          %s184 = int_to_ptr.vmem [resolvable:$true] %s183
          %189 = dma.hbm_to_vmem [thread:$0]  %s3, 1024, %s184, [#allocation7], 64, 64, 4
        $region24: #{tpu_custom_call.1} parent=11 // pred_fallthru
          _
      $region12: #{tpu_custom_call.1} parent=5 // pred_fallthru
        _
      %p190 = scmp.lt.s32.totalorder %s17, 4
      // Predicated region
      $region25: #{tpu_custom_call.1} parent=5 // pred_check
        %p191 = pneg %p190
      $region26: #{tpu_custom_call.1} parent=5 // pred_check_branch
        %193 = sbr.rel (%p191) target = $region28
      $region27: #{tpu_custom_call.1} parent=5 // pred_region
        // Predicated region
        $region29: #{tpu_custom_call.1} parent=27 // pred_check
          %p194 = pneg %p51
        $region30: #{tpu_custom_call.1} parent=27 // pred_check_branch
          %196 = sbr.rel (%p194) target = $region32
        $region31: #{tpu_custom_call.1} parent=27 // pred_region
          %s197 = sand.u32 %s41, 1
          %s198 = scalar_lea.sflag [#allocation4], %s197
          %s199 = sand.u32 %s41, 1
          %s200 = smul.addr %s199, 256
          %s201 = scalar_lea.vmem [#allocation3], %s200
          %s202 = smul.u32 32, %s24
          %s203 = smul.u32 2, %s25
          %s205 = ssub.s32 4096, 4096
          %206 = vsyncadd %s198, %s205
          %s207 = smul.addr %s202, 4
          %s208 = sadd.s32 %s203, %s207
          %s209 = smul.addr %s208, 64
          %s210 = scalar_lea.hbm %s0, %s209
          %s211 = sshll.u32 %s201, 4
          %s212 = int_to_ptr.vmem [resolvable:$true] %s211
          %217 = dma.hbm_to_vmem [thread:$0]  %s210, 4096, %s212, %s198, 256, 128, 8
        $region32: #{tpu_custom_call.1} parent=27 // pred_fallthru
          _
      $region28: #{tpu_custom_call.1} parent=5 // pred_fallthru
        _
      %p218 = scmp.le.s32.totalorder 1, %s17
      %p219 = scmp.lt.s32.totalorder %s17, 5
      %p220 = pnand %p218, %p219
      %p221 = pneg %p220
      // Predicated region
      $region33: #{tpu_custom_call.1} parent=5 // pred_check
        _
      $region34: #{tpu_custom_call.1} parent=5 // pred_check_branch
        %223 = sbr.rel (%p220) target = $region36
      $region35: #{tpu_custom_call.1} parent=5 // pred_region
        %s224 = ssub.s32 %s17, 1
        %s225 = sand.u32 %s44, 1
        %s226 = scalar_lea.sflag [#allocation4], %s225
        %s227 = sand.u32 %s44, 1
        %s228 = smul.addr %s227, 256
        %s229 = scalar_lea.vmem [#allocation3], %s228
        // Predicated region
        $region37: #{tpu_custom_call.1} parent=35 // pred_check
          %p230 = pneg %p57
        $region38: #{tpu_custom_call.1} parent=35 // pred_check_branch
          %232 = sbr.rel (%p230) target = $region40
        $region39: #{tpu_custom_call.1} parent=35 // pred_region
          %233 = dma.done %s226, 4096
        $region40: #{tpu_custom_call.1} parent=35 // pred_fallthru
          _
        // Predicated region
        $region41: #{tpu_custom_call.1} parent=35 // pred_check
          %p234 = pneg %p78
        $region42: #{tpu_custom_call.1} parent=35 // pred_check_branch
          %236 = sbr.rel (%p234) target = $region44
        $region43: #{tpu_custom_call.1} parent=35 // pred_region
          %237 = dma.done [#allocation7], 4096
        $region44: #{tpu_custom_call.1} parent=35 // pred_fallthru
          _
        // Predicated region
        $region45: #{tpu_custom_call.1} parent=35 // pred_check
          %p238 = pneg %p120
        $region46: #{tpu_custom_call.1} parent=35 // pred_check_branch
          %240 = sbr.rel (%p238) target = $region48
        $region47: #{tpu_custom_call.1} parent=35 // pred_region
          %241 = dma.done [#allocation7], 1024
        $region48: #{tpu_custom_call.1} parent=35 // pred_fallthru
          _
        %s242 = sand.u32 %s44, 1
        %s243 = scalar_lea.sflag [#allocation4], %s242
        %s244 = sand.u32 %s44, 1
        %s245 = smul.addr %s244, 256
        %s246 = scalar_lea.vmem [#allocation3], %s245
        %p247 = pneg %p57
        %p248 = pneg %p54
        %p249 = pneg %p78
        %p250 = pneg %p75
        %p251 = pneg %p99
        %p252 = pneg %p96
        %p253 = pneg %p120
        %p254 = pneg %p117
        %p255 = pneg %p146
        %p256 = pneg %p143
        %s257 = sand.u32 %s133, 1
        %s258 = scalar_lea.sflag [#allocation5], %s257
        %s259 = sand.u32 %s133, 1
        %s260 = smul.addr %s259, 128
        %s261 = scalar_lea.vmem [#allocation9], %s260
        %s262 = smul.u32 32, %s26
        %s263 = smul.u32 2, %s27
        %s264 = smul.u32 32, %s26
        %p266 = scmp.eq.s32.totalorder %s27, 0
        // Predicated region
        $region49: #{tpu_custom_call.1} parent=35 // pred_check
          %p267 = pneg %p266
        $region50: #{tpu_custom_call.1} parent=35 // pred_check_branch
          %269 = sbr.rel (%p267) target = $region52
        $region51: #{tpu_custom_call.1} parent=35 // pred_region
          %270 = vst [vmem:[#allocation2] sm:$0xff] 0.0
          %271 = vst [vmem:[#allocation2 + $0x8] sm:$0xff] 0.0
          %272 = vst [vmem:[#allocation2 + $0x10] sm:$0xff] 0.0
          %273 = vst [vmem:[#allocation2 + $0x18] sm:$0xff] 0.0
          %274 = vst [vmem:[#allocation2 + $0x20] sm:$0xff] 0.0
          %275 = vst [vmem:[#allocation2 + $0x28] sm:$0xff] 0.0
          %276 = vst [vmem:[#allocation2 + $0x30] sm:$0xff] 0.0
          %277 = vst [vmem:[#allocation2 + $0x38] sm:$0xff] 0.0
          %278 = vst [vmem:[#allocation2 + $0x40] sm:$0xff] 0.0
          %279 = vst [vmem:[#allocation2 + $0x48] sm:$0xff] 0.0
          %280 = vst [vmem:[#allocation2 + $0x50] sm:$0xff] 0.0
          %281 = vst [vmem:[#allocation2 + $0x58] sm:$0xff] 0.0
          %282 = vst [vmem:[#allocation2 + $0x60] sm:$0xff] 0.0
          %283 = vst [vmem:[#allocation2 + $0x68] sm:$0xff] 0.0
          %284 = vst [vmem:[#allocation2 + $0x70] sm:$0xff] 0.0
          %285 = vst [vmem:[#allocation2 + $0x78] sm:$0xff] 0.0
          %286 = vst [vmem:[#allocation2 + $0x80] sm:$0xff] 0.0
          %287 = vst [vmem:[#allocation2 + $0x88] sm:$0xff] 0.0
          %288 = vst [vmem:[#allocation2 + $0x90] sm:$0xff] 0.0
          %289 = vst [vmem:[#allocation2 + $0x98] sm:$0xff] 0.0
          %290 = vst [vmem:[#allocation2 + $0xa0] sm:$0xff] 0.0
          %291 = vst [vmem:[#allocation2 + $0xa8] sm:$0xff] 0.0
          %292 = vst [vmem:[#allocation2 + $0xb0] sm:$0xff] 0.0
          %293 = vst [vmem:[#allocation2 + $0xb8] sm:$0xff] 0.0
          %294 = vst [vmem:[#allocation2 + $0xc0] sm:$0xff] 0.0
          %295 = vst [vmem:[#allocation2 + $0xc8] sm:$0xff] 0.0
          %296 = vst [vmem:[#allocation2 + $0xd0] sm:$0xff] 0.0
          %297 = vst [vmem:[#allocation2 + $0xd8] sm:$0xff] 0.0
          %298 = vst [vmem:[#allocation2 + $0xe0] sm:$0xff] 0.0
          %299 = vst [vmem:[#allocation2 + $0xe8] sm:$0xff] 0.0
          %300 = vst [vmem:[#allocation2 + $0xf0] sm:$0xff] 0.0
          %301 = vst [vmem:[#allocation2 + $0xf8] sm:$0xff] 0.0
        $region52: #{tpu_custom_call.1} parent=35 // pred_fallthru
          _
        %s302 = smul.u32 %s27, 256
        %v303 = vld [vmem:[#allocation2] sm:$0xff]
        %v304 = vld [vmem:[#allocation2 + $0x8] sm:$0xff]
        %v305 = vld [vmem:[#allocation2 + $0x10] sm:$0xff]
        %v306 = vld [vmem:[#allocation2 + $0x18] sm:$0xff]
        %v307 = vld [vmem:[#allocation2 + $0x20] sm:$0xff]
        %v308 = vld [vmem:[#allocation2 + $0x28] sm:$0xff]
        %v309 = vld [vmem:[#allocation2 + $0x30] sm:$0xff]
        %v310 = vld [vmem:[#allocation2 + $0x38] sm:$0xff]
        %v311 = vld [vmem:[#allocation2 + $0x40] sm:$0xff]
        %v312 = vld [vmem:[#allocation2 + $0x48] sm:$0xff]
        %v313 = vld [vmem:[#allocation2 + $0x50] sm:$0xff]
        %v314 = vld [vmem:[#allocation2 + $0x58] sm:$0xff]
        %v315 = vld [vmem:[#allocation2 + $0x60] sm:$0xff]
        %v316 = vld [vmem:[#allocation2 + $0x68] sm:$0xff]
        %v317 = vld [vmem:[#allocation2 + $0x70] sm:$0xff]
        %v318 = vld [vmem:[#allocation2 + $0x78] sm:$0xff]
        %v319 = vld [vmem:[#allocation2 + $0x80] sm:$0xff]
        %v320 = vld [vmem:[#allocation2 + $0x88] sm:$0xff]
        %v321 = vld [vmem:[#allocation2 + $0x90] sm:$0xff]
        %v322 = vld [vmem:[#allocation2 + $0x98] sm:$0xff]
        %v323 = vld [vmem:[#allocation2 + $0xa0] sm:$0xff]
        %v324 = vld [vmem:[#allocation2 + $0xa8] sm:$0xff]
        %v325 = vld [vmem:[#allocation2 + $0xb0] sm:$0xff]
        %v326 = vld [vmem:[#allocation2 + $0xb8] sm:$0xff]
        %v327 = vld [vmem:[#allocation2 + $0xc0] sm:$0xff]
        %v328 = vld [vmem:[#allocation2 + $0xc8] sm:$0xff]
        %v329 = vld [vmem:[#allocation2 + $0xd0] sm:$0xff]
        %v330 = vld [vmem:[#allocation2 + $0xd8] sm:$0xff]
        %v331 = vld [vmem:[#allocation2 + $0xe0] sm:$0xff]
        %v332 = vld [vmem:[#allocation2 + $0xe8] sm:$0xff]
        %v333 = vld [vmem:[#allocation2 + $0xf0] sm:$0xff]
        %v334 = vld [vmem:[#allocation2 + $0xf8] sm:$0xff]
        %v335 = vld [vmem:[%s229] sm:$0xff]
        %v336 = vld [vmem:[%s229 + $0x8] sm:$0xff]
        %v337 = vld [vmem:[%s229 + $0x10] sm:$0xff]
        %v338 = vld [vmem:[%s229 + $0x18] sm:$0xff]
        %v339 = vld [vmem:[%s229 + $0x20] sm:$0xff]
        %v340 = vld [vmem:[%s229 + $0x28] sm:$0xff]
        %v341 = vld [vmem:[%s229 + $0x30] sm:$0xff]
        %v342 = vld [vmem:[%s229 + $0x38] sm:$0xff]
        %v343 = vld [vmem:[%s229 + $0x40] sm:$0xff]
        %v344 = vld [vmem:[%s229 + $0x48] sm:$0xff]
        %v345 = vld [vmem:[%s229 + $0x50] sm:$0xff]
        %v346 = vld [vmem:[%s229 + $0x58] sm:$0xff]
        %v347 = vld [vmem:[%s229 + $0x60] sm:$0xff]
        %v348 = vld [vmem:[%s229 + $0x68] sm:$0xff]
        %v349 = vld [vmem:[%s229 + $0x70] sm:$0xff]
        %v350 = vld [vmem:[%s229 + $0x78] sm:$0xff]
        %v351 = vld [vmem:[%s229 + $0x80] sm:$0xff]
        %v352 = vld [vmem:[%s229 + $0x88] sm:$0xff]
        %v353 = vld [vmem:[%s229 + $0x90] sm:$0xff]
        %v354 = vld [vmem:[%s229 + $0x98] sm:$0xff]
        %v355 = vld [vmem:[%s229 + $0xa0] sm:$0xff]
        %v356 = vld [vmem:[%s229 + $0xa8] sm:$0xff]
        %v357 = vld [vmem:[%s229 + $0xb0] sm:$0xff]
        %v358 = vld [vmem:[%s229 + $0xb8] sm:$0xff]
        %v359 = vld [vmem:[%s229 + $0xc0] sm:$0xff]
        %v360 = vld [vmem:[%s229 + $0xc8] sm:$0xff]
        %v361 = vld [vmem:[%s229 + $0xd0] sm:$0xff]
        %v362 = vld [vmem:[%s229 + $0xd8] sm:$0xff]
        %v363 = vld [vmem:[%s229 + $0xe0] sm:$0xff]
        %v364 = vld [vmem:[%s229 + $0xe8] sm:$0xff]
        %v365 = vld [vmem:[%s229 + $0xf0] sm:$0xff]
        %v366 = vld [vmem:[%s229 + $0xf8] sm:$0xff]
        %s367 = sshra.s32 %s302, 3
        %s368 = sand.u32 %s302, 7
        %s369 = smul.addr %s367, 4
        %s370 = scalar_lea.vmem [#allocation6], %s369
        %v371 = vld [vmem:[%s370] sm:$0xf]
        %v372 = vld [vmem:[%s370 + $0x4] sm:$0xf]
        %v373 = vld [vmem:[%s370 + $0x8] sm:$0xf]
        %v374 = vld [vmem:[%s370 + $0xc] sm:$0xf]
        %v375 = vld [vmem:[%s370 + $0x10] sm:$0xf]
        %v376 = vld [vmem:[%s370 + $0x14] sm:$0xf]
        %v377 = vld [vmem:[%s370 + $0x18] sm:$0xf]
        %v378 = vld [vmem:[%s370 + $0x1c] sm:$0xf]
        %v379 = vld [vmem:[%s370 + $0x20] sm:$0xf]
        %v380 = vld [vmem:[%s370 + $0x24] sm:$0xf]
        %v381 = vld [vmem:[%s370 + $0x28] sm:$0xf]
        %v382 = vld [vmem:[%s370 + $0x2c] sm:$0xf]
        %v383 = vld [vmem:[%s370 + $0x30] sm:$0xf]
        %v384 = vld [vmem:[%s370 + $0x34] sm:$0xf]
        %v385 = vld [vmem:[%s370 + $0x38] sm:$0xf]
        %v386 = vld [vmem:[%s370 + $0x3c] sm:$0xf]
        %v387 = vld [vmem:[%s370 + $0x40] sm:$0xf]
        %v388 = vld [vmem:[%s370 + $0x44] sm:$0xf]
        %v389 = vld [vmem:[%s370 + $0x48] sm:$0xf]
        %v390 = vld [vmem:[%s370 + $0x4c] sm:$0xf]
        %v391 = vld [vmem:[%s370 + $0x50] sm:$0xf]
        %v392 = vld [vmem:[%s370 + $0x54] sm:$0xf]
        %v393 = vld [vmem:[%s370 + $0x58] sm:$0xf]
        %v394 = vld [vmem:[%s370 + $0x5c] sm:$0xf]
        %v395 = vld [vmem:[%s370 + $0x60] sm:$0xf]
        %v396 = vld [vmem:[%s370 + $0x64] sm:$0xf]
        %v397 = vld [vmem:[%s370 + $0x68] sm:$0xf]
        %v398 = vld [vmem:[%s370 + $0x6c] sm:$0xf]
        %v399 = vld [vmem:[%s370 + $0x70] sm:$0xf]
        %v400 = vld [vmem:[%s370 + $0x74] sm:$0xf]
        %v401 = vld [vmem:[%s370 + $0x78] sm:$0xf]
        %v402 = vld [vmem:[%s370 + $0x7c] sm:$0xf]
        %v435 = vunpack.c.l.b16 %v335
        %v436 = vunpack.c.h.b16 %v335
        %v437 = vunpack.c.l.b16 %v336
        %v438 = vunpack.c.h.b16 %v336
        %v439 = vunpack.c.l.b16 %v337
        %v440 = vunpack.c.h.b16 %v337
        %v441 = vunpack.c.l.b16 %v338
        %v442 = vunpack.c.h.b16 %v338
        %v443 = vunpack.c.l.b16 %v339
        %v444 = vunpack.c.h.b16 %v339
        %v445 = vunpack.c.l.b16 %v340
        %v446 = vunpack.c.h.b16 %v340
        %v447 = vunpack.c.l.b16 %v341
        %v448 = vunpack.c.h.b16 %v341
        %v449 = vunpack.c.l.b16 %v342
        %v450 = vunpack.c.h.b16 %v342
        %v451 = vunpack.c.l.b16 %v343
        %v452 = vunpack.c.h.b16 %v343
        %v453 = vunpack.c.l.b16 %v344
        %v454 = vunpack.c.h.b16 %v344
        %v455 = vunpack.c.l.b16 %v345
        %v456 = vunpack.c.h.b16 %v345
        %v457 = vunpack.c.l.b16 %v346
        %v458 = vunpack.c.h.b16 %v346
        %v459 = vunpack.c.l.b16 %v347
        %v460 = vunpack.c.h.b16 %v347
        %v461 = vunpack.c.l.b16 %v348
        %v462 = vunpack.c.h.b16 %v348
        %v463 = vunpack.c.l.b16 %v349
        %v464 = vunpack.c.h.b16 %v349
        %v465 = vunpack.c.l.b16 %v350
        %v466 = vunpack.c.h.b16 %v350
        %v467 = vunpack.c.l.b16 %v351
        %v468 = vunpack.c.h.b16 %v351
        %v469 = vunpack.c.l.b16 %v352
        %v470 = vunpack.c.h.b16 %v352
        %v471 = vunpack.c.l.b16 %v353
        %v472 = vunpack.c.h.b16 %v353
        %v473 = vunpack.c.l.b16 %v354
        %v474 = vunpack.c.h.b16 %v354
        %v475 = vunpack.c.l.b16 %v355
        %v476 = vunpack.c.h.b16 %v355
        %v477 = vunpack.c.l.b16 %v356
        %v478 = vunpack.c.h.b16 %v356
        %v479 = vunpack.c.l.b16 %v357
        %v480 = vunpack.c.h.b16 %v357
        %v481 = vunpack.c.l.b16 %v358
        %v482 = vunpack.c.h.b16 %v358
        %v483 = vunpack.c.l.b16 %v359
        %v484 = vunpack.c.h.b16 %v359
        %v485 = vunpack.c.l.b16 %v360
        %v486 = vunpack.c.h.b16 %v360
        %v487 = vunpack.c.l.b16 %v361
        %v488 = vunpack.c.h.b16 %v361
        %v489 = vunpack.c.l.b16 %v362
        %v490 = vunpack.c.h.b16 %v362
        %v491 = vunpack.c.l.b16 %v363
        %v492 = vunpack.c.h.b16 %v363
        %v493 = vunpack.c.l.b16 %v364
        %v494 = vunpack.c.h.b16 %v364
        %v495 = vunpack.c.l.b16 %v365
        %v496 = vunpack.c.h.b16 %v365
        %v497 = vunpack.c.l.b16 %v366
        %v498 = vunpack.c.h.b16 %v366
        %v499 = vpack.c.b16 %v437, %v435
        %v500 = vpack.c.b16 %v438, %v436
        %v501 = vpack.c.b16 %v441, %v439
        %v502 = vpack.c.b16 %v442, %v440
        %v503 = vpack.c.b16 %v445, %v443
        %v504 = vpack.c.b16 %v446, %v444
        %v505 = vpack.c.b16 %v449, %v447
        %v506 = vpack.c.b16 %v450, %v448
        %v507 = vpack.c.b16 %v453, %v451
        %v508 = vpack.c.b16 %v454, %v452
        %v509 = vpack.c.b16 %v457, %v455
        %v510 = vpack.c.b16 %v458, %v456
        %v511 = vpack.c.b16 %v461, %v459
        %v512 = vpack.c.b16 %v462, %v460
        %v513 = vpack.c.b16 %v465, %v463
        %v514 = vpack.c.b16 %v466, %v464
        %v515 = vpack.c.b16 %v469, %v467
        %v516 = vpack.c.b16 %v470, %v468
        %v517 = vpack.c.b16 %v473, %v471
        %v518 = vpack.c.b16 %v474, %v472
        %v519 = vpack.c.b16 %v477, %v475
        %v520 = vpack.c.b16 %v478, %v476
        %v521 = vpack.c.b16 %v481, %v479
        %v522 = vpack.c.b16 %v482, %v480
        %v523 = vpack.c.b16 %v485, %v483
        %v524 = vpack.c.b16 %v486, %v484
        %v525 = vpack.c.b16 %v489, %v487
        %v526 = vpack.c.b16 %v490, %v488
        %v527 = vpack.c.b16 %v493, %v491
        %v528 = vpack.c.b16 %v494, %v492
        %v529 = vpack.c.b16 %v497, %v495
        %v530 = vpack.c.b16 %v498, %v496
        %v595 = vunpack.c.l.b16 %v371
        %v596 = vunpack.c.l.b16 %v372
        %v597 = vunpack.c.l.b16 %v373
        %v598 = vunpack.c.l.b16 %v374
        %v599 = vunpack.c.l.b16 %v375
        %v600 = vunpack.c.l.b16 %v376
        %v601 = vunpack.c.l.b16 %v377
        %v602 = vunpack.c.l.b16 %v378
        %v603 = vunpack.c.l.b16 %v379
        %v604 = vunpack.c.l.b16 %v380
        %v605 = vunpack.c.l.b16 %v381
        %v606 = vunpack.c.l.b16 %v382
        %v607 = vunpack.c.l.b16 %v383
        %v608 = vunpack.c.l.b16 %v384
        %v609 = vunpack.c.l.b16 %v385
        %v610 = vunpack.c.l.b16 %v386
        %v611 = vunpack.c.l.b16 %v387
        %v612 = vunpack.c.l.b16 %v388
        %v613 = vunpack.c.l.b16 %v389
        %v614 = vunpack.c.l.b16 %v390
        %v615 = vunpack.c.l.b16 %v391
        %v616 = vunpack.c.l.b16 %v392
        %v617 = vunpack.c.l.b16 %v393
        %v618 = vunpack.c.l.b16 %v394
        %v619 = vunpack.c.l.b16 %v395
        %v620 = vunpack.c.l.b16 %v396
        %v621 = vunpack.c.l.b16 %v397
        %v622 = vunpack.c.l.b16 %v398
        %v623 = vunpack.c.l.b16 %v399
        %v624 = vunpack.c.l.b16 %v400
        %v625 = vunpack.c.l.b16 %v401
        %v626 = vunpack.c.l.b16 %v402
        %v627 = vpack.c.b16 %v596, %v595
        %v628 = vpack.c.b16 %v598, %v597
        %v629 = vpack.c.b16 %v600, %v599
        %v630 = vpack.c.b16 %v602, %v601
        %v631 = vpack.c.b16 %v604, %v603
        %v632 = vpack.c.b16 %v606, %v605
        %v633 = vpack.c.b16 %v608, %v607
        %v634 = vpack.c.b16 %v610, %v609
        %v635 = vpack.c.b16 %v612, %v611
        %v636 = vpack.c.b16 %v614, %v613
        %v637 = vpack.c.b16 %v616, %v615
        %v638 = vpack.c.b16 %v618, %v617
        %v639 = vpack.c.b16 %v620, %v619
        %v640 = vpack.c.b16 %v622, %v621
        %v641 = vpack.c.b16 %v624, %v623
        %v642 = vpack.c.b16 %v626, %v625
        %659 = vmatprep.subr.bf16.mxu0 0
        %660 = vmatpush1.bf16.msra.mxu0 %v634
        %661 = vmatprep.subr.bf16.mxu0 0
        %662 = vmatpush1.bf16.msra.mxu0 %v633
        %663 = vmatprep.subr.bf16.mxu0 0
        %664 = vmatpush1.bf16.msra.mxu0 %v632
        %665 = vmatprep.subr.bf16.mxu0 0
        %666 = vmatpush1.bf16.msra.mxu0 %v631
        %667 = vmatprep.subr.bf16.mxu0 0
        %668 = vmatpush1.bf16.msra.mxu0 %v630
        %669 = vmatprep.subr.bf16.mxu0 0
        %670 = vmatpush1.bf16.msra.mxu0 %v629
        %671 = vmatprep.subr.bf16.mxu0 0
        %672 = vmatpush1.bf16.msra.mxu0 %v628
        %673 = vmatprep.subr.bf16.mxu0 0
        %674 = vmatpush1.bf16.msra.mxu0 %v627
        %675 = vmatprep.subr.bf16.mxu0 0
        %676 = vmatpush2.bf16.msra.mxu0 %v642
        %677 = vmatprep.subr.bf16.mxu0 0
        %678 = vmatpush2.bf16.msra.mxu0 %v641
        %679 = vmatprep.subr.bf16.mxu0 0
        %680 = vmatpush2.bf16.msra.mxu0 %v640
        %681 = vmatprep.subr.bf16.mxu0 0
        %682 = vmatpush2.bf16.msra.mxu0 %v639
        %683 = vmatprep.subr.bf16.mxu0 0
        %684 = vmatpush2.bf16.msra.mxu0 %v638
        %685 = vmatprep.subr.bf16.mxu0 0
        %686 = vmatpush2.bf16.msra.mxu0 %v637
        %687 = vmatprep.subr.bf16.mxu0 0
        %688 = vmatpush2.bf16.msra.mxu0 %v636
        %689 = vmatprep.subr.bf16.mxu0 0
        %690 = vmatpush2.bf16.msra.mxu0 %v635
        %691 = vmatprep.mubr.bf16.mxu0 %v500
        %692 = vmatmul.mubr.bf16.gmra.mxu0 %v499
        %v693 = vpop.f32.mrf.mxu0
        %v694 = vadd.f32 0.0, %v693
        %v695 = vpop.f32.mrf.mxu0
        %v696 = vpop.f32.mrf.mxu0
        %v697 = vadd.f32 0.0, %v696
        %v698 = vpop.f32.mrf.mxu0
        %699 = vmatprep.mubr.bf16.mxu0 %v502
        %700 = vmatmul.mubr.bf16.gmra.mxu0 %v501
        %v701 = vpop.f32.mrf.mxu0
        %v702 = vadd.f32 0.0, %v701
        %v703 = vpop.f32.mrf.mxu0
        %v704 = vpop.f32.mrf.mxu0
        %v705 = vadd.f32 0.0, %v704
        %v706 = vpop.f32.mrf.mxu0
        %707 = vmatprep.mubr.bf16.mxu0 %v504
        %708 = vmatmul.mubr.bf16.gmra.mxu0 %v503
        %v709 = vpop.f32.mrf.mxu0
        %v710 = vadd.f32 0.0, %v709
        %v711 = vpop.f32.mrf.mxu0
        %v712 = vpop.f32.mrf.mxu0
        %v713 = vadd.f32 0.0, %v712
        %v714 = vpop.f32.mrf.mxu0
        %715 = vmatprep.mubr.bf16.mxu0 %v506
        %716 = vmatmul.mubr.bf16.gmra.mxu0 %v505
        %v717 = vpop.f32.mrf.mxu0
        %v718 = vadd.f32 0.0, %v717
        %v719 = vpop.f32.mrf.mxu0
        %v720 = vpop.f32.mrf.mxu0
        %v721 = vadd.f32 0.0, %v720
        %v722 = vpop.f32.mrf.mxu0
        %723 = vmatprep.mubr.bf16.mxu0 %v508
        %724 = vmatmul.mubr.bf16.gmra.mxu0 %v507
        %v725 = vpop.f32.mrf.mxu0
        %v726 = vadd.f32 0.0, %v725
        %v727 = vpop.f32.mrf.mxu0
        %v728 = vpop.f32.mrf.mxu0
        %v729 = vadd.f32 0.0, %v728
        %v730 = vpop.f32.mrf.mxu0
        %731 = vmatprep.mubr.bf16.mxu0 %v510
        %732 = vmatmul.mubr.bf16.gmra.mxu0 %v509
        %v733 = vpop.f32.mrf.mxu0
        %v734 = vadd.f32 0.0, %v733
        %v735 = vpop.f32.mrf.mxu0
        %v736 = vpop.f32.mrf.mxu0
        %v737 = vadd.f32 0.0, %v736
        %v738 = vpop.f32.mrf.mxu0
        %739 = vmatprep.mubr.bf16.mxu0 %v512
        %740 = vmatmul.mubr.bf16.gmra.mxu0 %v511
        %v741 = vpop.f32.mrf.mxu0
        %v742 = vadd.f32 0.0, %v741
        %v743 = vpop.f32.mrf.mxu0
        %v744 = vpop.f32.mrf.mxu0
        %v745 = vadd.f32 0.0, %v744
        %v746 = vpop.f32.mrf.mxu0
        %747 = vmatprep.mubr.bf16.mxu0 %v514
        %748 = vmatmul.mubr.bf16.gmra.mxu0 %v513
        %v749 = vpop.f32.mrf.mxu0
        %v750 = vadd.f32 0.0, %v749
        %v751 = vpop.f32.mrf.mxu0
        %v752 = vpop.f32.mrf.mxu0
        %v753 = vadd.f32 0.0, %v752
        %v754 = vpop.f32.mrf.mxu0
        %755 = vmatprep.mubr.bf16.mxu0 %v516
        %756 = vmatmul.mubr.bf16.gmra.mxu0 %v515
        %v757 = vpop.f32.mrf.mxu0
        %v758 = vadd.f32 0.0, %v757
        %v759 = vpop.f32.mrf.mxu0
        %v760 = vpop.f32.mrf.mxu0
        %v761 = vadd.f32 0.0, %v760
        %v762 = vpop.f32.mrf.mxu0
        %763 = vmatprep.mubr.bf16.mxu0 %v518
        %764 = vmatmul.mubr.bf16.gmra.mxu0 %v517
        %v765 = vpop.f32.mrf.mxu0
        %v766 = vadd.f32 0.0, %v765
        %v767 = vpop.f32.mrf.mxu0
        %v768 = vpop.f32.mrf.mxu0
        %v769 = vadd.f32 0.0, %v768
        %v770 = vpop.f32.mrf.mxu0
        %771 = vmatprep.mubr.bf16.mxu0 %v520
        %772 = vmatmul.mubr.bf16.gmra.mxu0 %v519
        %v773 = vpop.f32.mrf.mxu0
        %v774 = vadd.f32 0.0, %v773
        %v775 = vpop.f32.mrf.mxu0
        %v776 = vpop.f32.mrf.mxu0
        %v777 = vadd.f32 0.0, %v776
        %v778 = vpop.f32.mrf.mxu0
        %779 = vmatprep.mubr.bf16.mxu0 %v522
        %780 = vmatmul.mubr.bf16.gmra.mxu0 %v521
        %v781 = vpop.f32.mrf.mxu0
        %v782 = vadd.f32 0.0, %v781
        %v783 = vpop.f32.mrf.mxu0
        %v784 = vpop.f32.mrf.mxu0
        %v785 = vadd.f32 0.0, %v784
        %v786 = vpop.f32.mrf.mxu0
        %787 = vmatprep.mubr.bf16.mxu0 %v524
        %788 = vmatmul.mubr.bf16.gmra.mxu0 %v523
        %v789 = vpop.f32.mrf.mxu0
        %v790 = vadd.f32 0.0, %v789
        %v791 = vpop.f32.mrf.mxu0
        %v792 = vpop.f32.mrf.mxu0
        %v793 = vadd.f32 0.0, %v792
        %v794 = vpop.f32.mrf.mxu0
        %795 = vmatprep.mubr.bf16.mxu0 %v526
        %796 = vmatmul.mubr.bf16.gmra.mxu0 %v525
        %v797 = vpop.f32.mrf.mxu0
        %v798 = vadd.f32 0.0, %v797
        %v799 = vpop.f32.mrf.mxu0
        %v800 = vpop.f32.mrf.mxu0
        %v801 = vadd.f32 0.0, %v800
        %v802 = vpop.f32.mrf.mxu0
        %803 = vmatprep.mubr.bf16.mxu0 %v528
        %804 = vmatmul.mubr.bf16.gmra.mxu0 %v527
        %v805 = vpop.f32.mrf.mxu0
        %v806 = vadd.f32 0.0, %v805
        %v807 = vpop.f32.mrf.mxu0
        %v808 = vpop.f32.mrf.mxu0
        %v809 = vadd.f32 0.0, %v808
        %v810 = vpop.f32.mrf.mxu0
        %811 = vmatprep.mubr.bf16.mxu0 %v530
        %812 = vmatmul.mubr.bf16.gmra.mxu0 %v529
        %v813 = vpop.f32.mrf.mxu0
        %v814 = vadd.f32 0.0, %v813
        %v815 = vpop.f32.mrf.mxu0
        %v816 = vpop.f32.mrf.mxu0
        %v817 = vadd.f32 0.0, %v816
        %v818 = vpop.f32.mrf.mxu0
        %819 = vdwg.mxu0
        %v820 = vadd.f32 %v303, %v694
        %v821 = vadd.f32 %v304, %v697
        %v822 = vadd.f32 %v305, %v702
        %v823 = vadd.f32 %v306, %v705
        %v824 = vadd.f32 %v307, %v710
        %v825 = vadd.f32 %v308, %v713
        %v826 = vadd.f32 %v309, %v718
        %v827 = vadd.f32 %v310, %v721
        %v828 = vadd.f32 %v311, %v726
        %v829 = vadd.f32 %v312, %v729
        %v830 = vadd.f32 %v313, %v734
        %v831 = vadd.f32 %v314, %v737
        %v832 = vadd.f32 %v315, %v742
        %v833 = vadd.f32 %v316, %v745
        %v834 = vadd.f32 %v317, %v750
        %v835 = vadd.f32 %v318, %v753
        %v836 = vadd.f32 %v319, %v758
        %v837 = vadd.f32 %v320, %v761
        %v838 = vadd.f32 %v321, %v766
        %v839 = vadd.f32 %v322, %v769
        %v840 = vadd.f32 %v323, %v774
        %v841 = vadd.f32 %v324, %v777
        %v842 = vadd.f32 %v325, %v782
        %v843 = vadd.f32 %v326, %v785
        %v844 = vadd.f32 %v327, %v790
        %v845 = vadd.f32 %v328, %v793
        %v846 = vadd.f32 %v329, %v798
        %v847 = vadd.f32 %v330, %v801
        %v848 = vadd.f32 %v331, %v806
        %v849 = vadd.f32 %v332, %v809
        %v850 = vadd.f32 %v333, %v814
        %v851 = vadd.f32 %v334, %v817
        %852 = vst [vmem:[#allocation2] sm:$0xff] %v820
        %853 = vst [vmem:[#allocation2 + $0x8] sm:$0xff] %v821
        %854 = vst [vmem:[#allocation2 + $0x10] sm:$0xff] %v822
        %855 = vst [vmem:[#allocation2 + $0x18] sm:$0xff] %v823
        %856 = vst [vmem:[#allocation2 + $0x20] sm:$0xff] %v824
        %857 = vst [vmem:[#allocation2 + $0x28] sm:$0xff] %v825
        %858 = vst [vmem:[#allocation2 + $0x30] sm:$0xff] %v826
        %859 = vst [vmem:[#allocation2 + $0x38] sm:$0xff] %v827
        %860 = vst [vmem:[#allocation2 + $0x40] sm:$0xff] %v828
        %861 = vst [vmem:[#allocation2 + $0x48] sm:$0xff] %v829
        %862 = vst [vmem:[#allocation2 + $0x50] sm:$0xff] %v830
        %863 = vst [vmem:[#allocation2 + $0x58] sm:$0xff] %v831
        %864 = vst [vmem:[#allocation2 + $0x60] sm:$0xff] %v832
        %865 = vst [vmem:[#allocation2 + $0x68] sm:$0xff] %v833
        %866 = vst [vmem:[#allocation2 + $0x70] sm:$0xff] %v834
        %867 = vst [vmem:[#allocation2 + $0x78] sm:$0xff] %v835
        %868 = vst [vmem:[#allocation2 + $0x80] sm:$0xff] %v836
        %869 = vst [vmem:[#allocation2 + $0x88] sm:$0xff] %v837
        %870 = vst [vmem:[#allocation2 + $0x90] sm:$0xff] %v838
        %871 = vst [vmem:[#allocation2 + $0x98] sm:$0xff] %v839
        %872 = vst [vmem:[#allocation2 + $0xa0] sm:$0xff] %v840
        %873 = vst [vmem:[#allocation2 + $0xa8] sm:$0xff] %v841
        %874 = vst [vmem:[#allocation2 + $0xb0] sm:$0xff] %v842
        %875 = vst [vmem:[#allocation2 + $0xb8] sm:$0xff] %v843
        %876 = vst [vmem:[#allocation2 + $0xc0] sm:$0xff] %v844
        %877 = vst [vmem:[#allocation2 + $0xc8] sm:$0xff] %v845
        %878 = vst [vmem:[#allocation2 + $0xd0] sm:$0xff] %v846
        %879 = vst [vmem:[#allocation2 + $0xd8] sm:$0xff] %v847
        %880 = vst [vmem:[#allocation2 + $0xe0] sm:$0xff] %v848
        %881 = vst [vmem:[#allocation2 + $0xe8] sm:$0xff] %v849
        %882 = vst [vmem:[#allocation2 + $0xf0] sm:$0xff] %v850
        %883 = vst [vmem:[#allocation2 + $0xf8] sm:$0xff] %v851
        %p884 = scmp.eq.s32.totalorder %s27, 1
        // Predicated region
        $region53: #{tpu_custom_call.1} parent=35 // pred_check
          %p885 = pneg %p884
        $region54: #{tpu_custom_call.1} parent=35 // pred_check_branch
          %887 = sbr.rel (%p885) target = $region56
        $region55: #{tpu_custom_call.1} parent=35 // pred_region
          %v888 = vld [vmem:[#allocation2] sm:$0xff]
          %v889 = vld [vmem:[#allocation2 + $0x8] sm:$0xff]
          %v890 = vld [vmem:[#allocation2 + $0x10] sm:$0xff]
          %v891 = vld [vmem:[#allocation2 + $0x18] sm:$0xff]
          %v892 = vld [vmem:[#allocation2 + $0x20] sm:$0xff]
          %v893 = vld [vmem:[#allocation2 + $0x28] sm:$0xff]
          %v894 = vld [vmem:[#allocation2 + $0x30] sm:$0xff]
          %v895 = vld [vmem:[#allocation2 + $0x38] sm:$0xff]
          %v896 = vld [vmem:[#allocation2 + $0x40] sm:$0xff]
          %v897 = vld [vmem:[#allocation2 + $0x48] sm:$0xff]
          %v898 = vld [vmem:[#allocation2 + $0x50] sm:$0xff]
          %v899 = vld [vmem:[#allocation2 + $0x58] sm:$0xff]
          %v900 = vld [vmem:[#allocation2 + $0x60] sm:$0xff]
          %v901 = vld [vmem:[#allocation2 + $0x68] sm:$0xff]
          %v902 = vld [vmem:[#allocation2 + $0x70] sm:$0xff]
          %v903 = vld [vmem:[#allocation2 + $0x78] sm:$0xff]
          %v904 = vld [vmem:[#allocation2 + $0x80] sm:$0xff]
          %v905 = vld [vmem:[#allocation2 + $0x88] sm:$0xff]
          %v906 = vld [vmem:[#allocation2 + $0x90] sm:$0xff]
          %v907 = vld [vmem:[#allocation2 + $0x98] sm:$0xff]
          %v908 = vld [vmem:[#allocation2 + $0xa0] sm:$0xff]
          %v909 = vld [vmem:[#allocation2 + $0xa8] sm:$0xff]
          %v910 = vld [vmem:[#allocation2 + $0xb0] sm:$0xff]
          %v911 = vld [vmem:[#allocation2 + $0xb8] sm:$0xff]
          %v912 = vld [vmem:[#allocation2 + $0xc0] sm:$0xff]
          %v913 = vld [vmem:[#allocation2 + $0xc8] sm:$0xff]
          %v914 = vld [vmem:[#allocation2 + $0xd0] sm:$0xff]
          %v915 = vld [vmem:[#allocation2 + $0xd8] sm:$0xff]
          %v916 = vld [vmem:[#allocation2 + $0xe0] sm:$0xff]
          %v917 = vld [vmem:[#allocation2 + $0xe8] sm:$0xff]
          %v918 = vld [vmem:[#allocation2 + $0xf0] sm:$0xff]
          %v919 = vld [vmem:[#allocation2 + $0xf8] sm:$0xff]
          %v920 = vld [vmem:[%s2] sm:$0x1]
          %v922 = vlaneseq
          %v923 = vshrl.u32 %v922, 7
          %v924 = vsub.s32 0, %v923
          %v925 = vrot.slane %v920, %v924
          %v927 = vadd.f32 %v888, %v925
          %v928 = vadd.f32 %v889, %v925
          %v929 = vadd.f32 %v890, %v925
          %v930 = vadd.f32 %v891, %v925
          %v931 = vadd.f32 %v892, %v925
          %v932 = vadd.f32 %v893, %v925
          %v933 = vadd.f32 %v894, %v925
          %v934 = vadd.f32 %v895, %v925
          %v935 = vadd.f32 %v896, %v925
          %v936 = vadd.f32 %v897, %v925
          %v937 = vadd.f32 %v898, %v925
          %v938 = vadd.f32 %v899, %v925
          %v939 = vadd.f32 %v900, %v925
          %v940 = vadd.f32 %v901, %v925
          %v941 = vadd.f32 %v902, %v925
          %v942 = vadd.f32 %v903, %v925
          %v943 = vadd.f32 %v904, %v925
          %v944 = vadd.f32 %v905, %v925
          %v945 = vadd.f32 %v906, %v925
          %v946 = vadd.f32 %v907, %v925
          %v947 = vadd.f32 %v908, %v925
          %v948 = vadd.f32 %v909, %v925
          %v949 = vadd.f32 %v910, %v925
          %v950 = vadd.f32 %v911, %v925
          %v951 = vadd.f32 %v912, %v925
          %v952 = vadd.f32 %v913, %v925
          %v953 = vadd.f32 %v914, %v925
          %v954 = vadd.f32 %v915, %v925
          %v955 = vadd.f32 %v916, %v925
          %v956 = vadd.f32 %v917, %v925
          %v957 = vadd.f32 %v918, %v925
          %v958 = vadd.f32 %v919, %v925
          %v959 = vmax.f32 %v927, 0.0
          %v960 = vmax.f32 %v928, 0.0
          %v961 = vmax.f32 %v929, 0.0
          %v962 = vmax.f32 %v930, 0.0
          %v963 = vmax.f32 %v931, 0.0
          %v964 = vmax.f32 %v932, 0.0
          %v965 = vmax.f32 %v933, 0.0
          %v966 = vmax.f32 %v934, 0.0
          %v967 = vmax.f32 %v935, 0.0
          %v968 = vmax.f32 %v936, 0.0
          %v969 = vmax.f32 %v937, 0.0
          %v970 = vmax.f32 %v938, 0.0
          %v971 = vmax.f32 %v939, 0.0
          %v972 = vmax.f32 %v940, 0.0
          %v973 = vmax.f32 %v941, 0.0
          %v974 = vmax.f32 %v942, 0.0
          %v975 = vmax.f32 %v943, 0.0
          %v976 = vmax.f32 %v944, 0.0
          %v977 = vmax.f32 %v945, 0.0
          %v978 = vmax.f32 %v946, 0.0
          %v979 = vmax.f32 %v947, 0.0
          %v980 = vmax.f32 %v948, 0.0
          %v981 = vmax.f32 %v949, 0.0
          %v982 = vmax.f32 %v950, 0.0
          %v983 = vmax.f32 %v951, 0.0
          %v984 = vmax.f32 %v952, 0.0
          %v985 = vmax.f32 %v953, 0.0
          %v986 = vmax.f32 %v954, 0.0
          %v987 = vmax.f32 %v955, 0.0
          %v988 = vmax.f32 %v956, 0.0
          %v989 = vmax.f32 %v957, 0.0
          %v990 = vmax.f32 %v958, 0.0
          %v991 = vpack.c.bf16 %v960, %v959
          %v992 = vpack.c.bf16 %v962, %v961
          %v993 = vpack.c.bf16 %v964, %v963
          %v994 = vpack.c.bf16 %v966, %v965
          %v995 = vpack.c.bf16 %v968, %v967
          %v996 = vpack.c.bf16 %v970, %v969
          %v997 = vpack.c.bf16 %v972, %v971
          %v998 = vpack.c.bf16 %v974, %v973
          %v999 = vpack.c.bf16 %v976, %v975
          %v1000 = vpack.c.bf16 %v978, %v977
          %v1001 = vpack.c.bf16 %v980, %v979
          %v1002 = vpack.c.bf16 %v982, %v981
          %v1003 = vpack.c.bf16 %v984, %v983
          %v1004 = vpack.c.bf16 %v986, %v985
          %v1005 = vpack.c.bf16 %v988, %v987
          %v1006 = vpack.c.bf16 %v990, %v989
          %v1007 = vld [vmem:[#allocation8] sm:$0xf]
          %v1008 = vld [vmem:[#allocation8 + $0x4] sm:$0xf]
          %v1009 = vld [vmem:[#allocation8 + $0x8] sm:$0xf]
          %v1010 = vld [vmem:[#allocation8 + $0xc] sm:$0xf]
          %v1011 = vld [vmem:[#allocation8 + $0x10] sm:$0xf]
          %v1012 = vld [vmem:[#allocation8 + $0x14] sm:$0xf]
          %v1013 = vld [vmem:[#allocation8 + $0x18] sm:$0xf]
          %v1014 = vld [vmem:[#allocation8 + $0x1c] sm:$0xf]
          %v1015 = vld [vmem:[#allocation8 + $0x20] sm:$0xf]
          %v1016 = vld [vmem:[#allocation8 + $0x24] sm:$0xf]
          %v1017 = vld [vmem:[#allocation8 + $0x28] sm:$0xf]
          %v1018 = vld [vmem:[#allocation8 + $0x2c] sm:$0xf]
          %v1019 = vld [vmem:[#allocation8 + $0x30] sm:$0xf]
          %v1020 = vld [vmem:[#allocation8 + $0x34] sm:$0xf]
          %v1021 = vld [vmem:[#allocation8 + $0x38] sm:$0xf]
          %v1022 = vld [vmem:[#allocation8 + $0x3c] sm:$0xf]
          %v1039 = vunpack.c.l.b16 %v1007
          %v1040 = vunpack.c.l.b16 %v1008
          %v1041 = vunpack.c.l.b16 %v1009
          %v1042 = vunpack.c.l.b16 %v1010
          %v1043 = vunpack.c.l.b16 %v1011
          %v1044 = vunpack.c.l.b16 %v1012
          %v1045 = vunpack.c.l.b16 %v1013
          %v1046 = vunpack.c.l.b16 %v1014
          %v1047 = vunpack.c.l.b16 %v1015
          %v1048 = vunpack.c.l.b16 %v1016
          %v1049 = vunpack.c.l.b16 %v1017
          %v1050 = vunpack.c.l.b16 %v1018
          %v1051 = vunpack.c.l.b16 %v1019
          %v1052 = vunpack.c.l.b16 %v1020
          %v1053 = vunpack.c.l.b16 %v1021
          %v1054 = vunpack.c.l.b16 %v1022
          %v1055 = vpack.c.b16 %v1040, %v1039
          %v1056 = vpack.c.b16 %v1042, %v1041
          %v1057 = vpack.c.b16 %v1044, %v1043
          %v1058 = vpack.c.b16 %v1046, %v1045
          %v1059 = vpack.c.b16 %v1048, %v1047
          %v1060 = vpack.c.b16 %v1050, %v1049
          %v1061 = vpack.c.b16 %v1052, %v1051
          %v1062 = vpack.c.b16 %v1054, %v1053
          %1071 = vmatprep.subr.bf16.mxu0 0
          %1072 = vmatpush1.bf16.msra.mxu0 %v1062
          %1073 = vmatprep.subr.bf16.mxu0 0
          %1074 = vmatpush1.bf16.msra.mxu0 %v1061
          %1075 = vmatprep.subr.bf16.mxu0 0
          %1076 = vmatpush1.bf16.msra.mxu0 %v1060
          %1077 = vmatprep.subr.bf16.mxu0 0
          %1078 = vmatpush1.bf16.msra.mxu0 %v1059
          %1079 = vmatprep.subr.bf16.mxu0 0
          %1080 = vmatpush1.bf16.msra.mxu0 %v1058
          %1081 = vmatprep.subr.bf16.mxu0 0
          %1082 = vmatpush1.bf16.msra.mxu0 %v1057
          %1083 = vmatprep.subr.bf16.mxu0 0
          %1084 = vmatpush1.bf16.msra.mxu0 %v1056
          %1085 = vmatprep.subr.bf16.mxu0 0
          %1086 = vmatpush1.bf16.msra.mxu0 %v1055
          %1087 = vmatprep.subr.bf16.mxu0 0
          %1088 = vmatpush2.bf16.msra.mxu0 0
          %1089 = vmatprep.subr.bf16.mxu0 0
          %1090 = vmatpush2.bf16.msra.mxu0 0
          %1091 = vmatprep.subr.bf16.mxu0 0
          %1092 = vmatpush2.bf16.msra.mxu0 0
          %1093 = vmatprep.subr.bf16.mxu0 0
          %1094 = vmatpush2.bf16.msra.mxu0 0
          %1095 = vmatprep.subr.bf16.mxu0 0
          %1096 = vmatpush2.bf16.msra.mxu0 0
          %1097 = vmatprep.subr.bf16.mxu0 0
          %1098 = vmatpush2.bf16.msra.mxu0 0
          %1099 = vmatprep.subr.bf16.mxu0 0
          %1100 = vmatpush2.bf16.msra.mxu0 0
          %1101 = vmatprep.subr.bf16.mxu0 0
          %1102 = vmatpush2.bf16.msra.mxu0 0
          %1103 = vmatprep.mubr.bf16.mxu0 0
          %1104 = vmatmul.mubr.bf16.gmra.mxu0 %v991
          %v1105 = vpop.f32.mrf.mxu0
          %v1106 = vadd.f32 0.0, %v1105
          %v1107 = vpop.f32.mrf.mxu0
          %v1108 = vpop.f32.mrf.mxu0
          %v1109 = vadd.f32 0.0, %v1108
          %v1110 = vpop.f32.mrf.mxu0
          %1111 = vmatprep.mubr.bf16.mxu0 0
          %1112 = vmatmul.mubr.bf16.gmra.mxu0 %v992
          %v1113 = vpop.f32.mrf.mxu0
          %v1114 = vadd.f32 0.0, %v1113
          %v1115 = vpop.f32.mrf.mxu0
          %v1116 = vpop.f32.mrf.mxu0
          %v1117 = vadd.f32 0.0, %v1116
          %v1118 = vpop.f32.mrf.mxu0
          %1119 = vmatprep.mubr.bf16.mxu0 0
          %1120 = vmatmul.mubr.bf16.gmra.mxu0 %v993
          %v1121 = vpop.f32.mrf.mxu0
          %v1122 = vadd.f32 0.0, %v1121
          %v1123 = vpop.f32.mrf.mxu0
          %v1124 = vpop.f32.mrf.mxu0
          %v1125 = vadd.f32 0.0, %v1124
          %v1126 = vpop.f32.mrf.mxu0
          %1127 = vmatprep.mubr.bf16.mxu0 0
          %1128 = vmatmul.mubr.bf16.gmra.mxu0 %v994
          %v1129 = vpop.f32.mrf.mxu0
          %v1130 = vadd.f32 0.0, %v1129
          %v1131 = vpop.f32.mrf.mxu0
          %v1132 = vpop.f32.mrf.mxu0
          %v1133 = vadd.f32 0.0, %v1132
          %v1134 = vpop.f32.mrf.mxu0
          %1135 = vmatprep.mubr.bf16.mxu0 0
          %1136 = vmatmul.mubr.bf16.gmra.mxu0 %v995
          %v1137 = vpop.f32.mrf.mxu0
          %v1138 = vadd.f32 0.0, %v1137
          %v1139 = vpop.f32.mrf.mxu0
          %v1140 = vpop.f32.mrf.mxu0
          %v1141 = vadd.f32 0.0, %v1140
          %v1142 = vpop.f32.mrf.mxu0
          %1143 = vmatprep.mubr.bf16.mxu0 0
          %1144 = vmatmul.mubr.bf16.gmra.mxu0 %v996
          %v1145 = vpop.f32.mrf.mxu0
          %v1146 = vadd.f32 0.0, %v1145
          %v1147 = vpop.f32.mrf.mxu0
          %v1148 = vpop.f32.mrf.mxu0
          %v1149 = vadd.f32 0.0, %v1148
          %v1150 = vpop.f32.mrf.mxu0
          %1151 = vmatprep.mubr.bf16.mxu0 0
          %1152 = vmatmul.mubr.bf16.gmra.mxu0 %v997
          %v1153 = vpop.f32.mrf.mxu0
          %v1154 = vadd.f32 0.0, %v1153
          %v1155 = vpop.f32.mrf.mxu0
          %v1156 = vpop.f32.mrf.mxu0
          %v1157 = vadd.f32 0.0, %v1156
          %v1158 = vpop.f32.mrf.mxu0
          %1159 = vmatprep.mubr.bf16.mxu0 0
          %1160 = vmatmul.mubr.bf16.gmra.mxu0 %v998
          %v1161 = vpop.f32.mrf.mxu0
          %v1162 = vadd.f32 0.0, %v1161
          %v1163 = vpop.f32.mrf.mxu0
          %v1164 = vpop.f32.mrf.mxu0
          %v1165 = vadd.f32 0.0, %v1164
          %v1166 = vpop.f32.mrf.mxu0
          %1167 = vmatprep.mubr.bf16.mxu0 0
          %1168 = vmatmul.mubr.bf16.gmra.mxu0 %v999
          %v1169 = vpop.f32.mrf.mxu0
          %v1170 = vadd.f32 0.0, %v1169
          %v1171 = vpop.f32.mrf.mxu0
          %v1172 = vpop.f32.mrf.mxu0
          %v1173 = vadd.f32 0.0, %v1172
          %v1174 = vpop.f32.mrf.mxu0
          %1175 = vmatprep.mubr.bf16.mxu0 0
          %1176 = vmatmul.mubr.bf16.gmra.mxu0 %v1000
          %v1177 = vpop.f32.mrf.mxu0
          %v1178 = vadd.f32 0.0, %v1177
          %v1179 = vpop.f32.mrf.mxu0
          %v1180 = vpop.f32.mrf.mxu0
          %v1181 = vadd.f32 0.0, %v1180
          %v1182 = vpop.f32.mrf.mxu0
          %1183 = vmatprep.mubr.bf16.mxu0 0
          %1184 = vmatmul.mubr.bf16.gmra.mxu0 %v1001
          %v1185 = vpop.f32.mrf.mxu0
          %v1186 = vadd.f32 0.0, %v1185
          %v1187 = vpop.f32.mrf.mxu0
          %v1188 = vpop.f32.mrf.mxu0
          %v1189 = vadd.f32 0.0, %v1188
          %v1190 = vpop.f32.mrf.mxu0
          %1191 = vmatprep.mubr.bf16.mxu0 0
          %1192 = vmatmul.mubr.bf16.gmra.mxu0 %v1002
          %v1193 = vpop.f32.mrf.mxu0
          %v1194 = vadd.f32 0.0, %v1193
          %v1195 = vpop.f32.mrf.mxu0
          %v1196 = vpop.f32.mrf.mxu0
          %v1197 = vadd.f32 0.0, %v1196
          %v1198 = vpop.f32.mrf.mxu0
          %1199 = vmatprep.mubr.bf16.mxu0 0
          %1200 = vmatmul.mubr.bf16.gmra.mxu0 %v1003
          %v1201 = vpop.f32.mrf.mxu0
          %v1202 = vadd.f32 0.0, %v1201
          %v1203 = vpop.f32.mrf.mxu0
          %v1204 = vpop.f32.mrf.mxu0
          %v1205 = vadd.f32 0.0, %v1204
          %v1206 = vpop.f32.mrf.mxu0
          %1207 = vmatprep.mubr.bf16.mxu0 0
          %1208 = vmatmul.mubr.bf16.gmra.mxu0 %v1004
          %v1209 = vpop.f32.mrf.mxu0
          %v1210 = vadd.f32 0.0, %v1209
          %v1211 = vpop.f32.mrf.mxu0
          %v1212 = vpop.f32.mrf.mxu0
          %v1213 = vadd.f32 0.0, %v1212
          %v1214 = vpop.f32.mrf.mxu0
          %1215 = vmatprep.mubr.bf16.mxu0 0
          %1216 = vmatmul.mubr.bf16.gmra.mxu0 %v1005
          %v1217 = vpop.f32.mrf.mxu0
          %v1218 = vadd.f32 0.0, %v1217
          %v1219 = vpop.f32.mrf.mxu0
          %v1220 = vpop.f32.mrf.mxu0
          %v1221 = vadd.f32 0.0, %v1220
          %v1222 = vpop.f32.mrf.mxu0
          %1223 = vmatprep.mubr.bf16.mxu0 0
          %1224 = vmatmul.mubr.bf16.gmra.mxu0 %v1006
          %v1225 = vpop.f32.mrf.mxu0
          %v1226 = vadd.f32 0.0, %v1225
          %v1227 = vpop.f32.mrf.mxu0
          %v1228 = vpop.f32.mrf.mxu0
          %v1229 = vadd.f32 0.0, %v1228
          %v1230 = vpop.f32.mrf.mxu0
          %1231 = vdwg.mxu0
          %v1232 = vpack.c.bf16 %v1109, %v1106
          %v1233 = vpack.c.bf16 %v1117, %v1114
          %v1234 = vpack.c.bf16 %v1125, %v1122
          %v1235 = vpack.c.bf16 %v1133, %v1130
          %v1236 = vpack.c.bf16 %v1141, %v1138
          %v1237 = vpack.c.bf16 %v1149, %v1146
          %v1238 = vpack.c.bf16 %v1157, %v1154
          %v1239 = vpack.c.bf16 %v1165, %v1162
          %v1240 = vpack.c.bf16 %v1173, %v1170
          %v1241 = vpack.c.bf16 %v1181, %v1178
          %v1242 = vpack.c.bf16 %v1189, %v1186
          %v1243 = vpack.c.bf16 %v1197, %v1194
          %v1244 = vpack.c.bf16 %v1205, %v1202
          %v1245 = vpack.c.bf16 %v1213, %v1210
          %v1246 = vpack.c.bf16 %v1221, %v1218
          %v1247 = vpack.c.bf16 %v1229, %v1226
          %v1264 = vunpack.c.l.b16 %v1232
          %v1265 = vunpack.c.h.b16 %v1232
          %v1266 = vunpack.c.l.b16 %v1233
          %v1267 = vunpack.c.h.b16 %v1233
          %v1268 = vunpack.c.l.b16 %v1234
          %v1269 = vunpack.c.h.b16 %v1234
          %v1270 = vunpack.c.l.b16 %v1235
          %v1271 = vunpack.c.h.b16 %v1235
          %v1272 = vunpack.c.l.b16 %v1236
          %v1273 = vunpack.c.h.b16 %v1236
          %v1274 = vunpack.c.l.b16 %v1237
          %v1275 = vunpack.c.h.b16 %v1237
          %v1276 = vunpack.c.l.b16 %v1238
          %v1277 = vunpack.c.h.b16 %v1238
          %v1278 = vunpack.c.l.b16 %v1239
          %v1279 = vunpack.c.h.b16 %v1239
          %v1280 = vunpack.c.l.b16 %v1240
          %v1281 = vunpack.c.h.b16 %v1240
          %v1282 = vunpack.c.l.b16 %v1241
          %v1283 = vunpack.c.h.b16 %v1241
          %v1284 = vunpack.c.l.b16 %v1242
          %v1285 = vunpack.c.h.b16 %v1242
          %v1286 = vunpack.c.l.b16 %v1243
          %v1287 = vunpack.c.h.b16 %v1243
          %v1288 = vunpack.c.l.b16 %v1244
          %v1289 = vunpack.c.h.b16 %v1244
          %v1290 = vunpack.c.l.b16 %v1245
          %v1291 = vunpack.c.h.b16 %v1245
          %v1292 = vunpack.c.l.b16 %v1246
          %v1293 = vunpack.c.h.b16 %v1246
          %v1294 = vunpack.c.l.b16 %v1247
          %v1295 = vunpack.c.h.b16 %v1247
          %v1296 = vpack.c.b16 %v1264, %v1264
          %v1297 = vpack.c.b16 %v1265, %v1265
          %v1298 = vpack.c.b16 %v1266, %v1266
          %v1299 = vpack.c.b16 %v1267, %v1267
          %v1300 = vpack.c.b16 %v1268, %v1268
          %v1301 = vpack.c.b16 %v1269, %v1269
          %v1302 = vpack.c.b16 %v1270, %v1270
          %v1303 = vpack.c.b16 %v1271, %v1271
          %v1304 = vpack.c.b16 %v1272, %v1272
          %v1305 = vpack.c.b16 %v1273, %v1273
          %v1306 = vpack.c.b16 %v1274, %v1274
          %v1307 = vpack.c.b16 %v1275, %v1275
          %v1308 = vpack.c.b16 %v1276, %v1276
          %v1309 = vpack.c.b16 %v1277, %v1277
          %v1310 = vpack.c.b16 %v1278, %v1278
          %v1311 = vpack.c.b16 %v1279, %v1279
          %v1312 = vpack.c.b16 %v1280, %v1280
          %v1313 = vpack.c.b16 %v1281, %v1281
          %v1314 = vpack.c.b16 %v1282, %v1282
          %v1315 = vpack.c.b16 %v1283, %v1283
          %v1316 = vpack.c.b16 %v1284, %v1284
          %v1317 = vpack.c.b16 %v1285, %v1285
          %v1318 = vpack.c.b16 %v1286, %v1286
          %v1319 = vpack.c.b16 %v1287, %v1287
          %v1320 = vpack.c.b16 %v1288, %v1288
          %v1321 = vpack.c.b16 %v1289, %v1289
          %v1322 = vpack.c.b16 %v1290, %v1290
          %v1323 = vpack.c.b16 %v1291, %v1291
          %v1324 = vpack.c.b16 %v1292, %v1292
          %v1325 = vpack.c.b16 %v1293, %v1293
          %v1326 = vpack.c.b16 %v1294, %v1294
          %v1327 = vpack.c.b16 %v1295, %v1295
          %1360 = vst [vmem:[%s261] sm:$0xf] %v1296
          %1361 = vst [vmem:[%s261 + $0x4] sm:$0xf] %v1297
          %1362 = vst [vmem:[%s261 + $0x8] sm:$0xf] %v1298
          %1363 = vst [vmem:[%s261 + $0xc] sm:$0xf] %v1299
          %1364 = vst [vmem:[%s261 + $0x10] sm:$0xf] %v1300
          %1365 = vst [vmem:[%s261 + $0x14] sm:$0xf] %v1301
          %1366 = vst [vmem:[%s261 + $0x18] sm:$0xf] %v1302
          %1367 = vst [vmem:[%s261 + $0x1c] sm:$0xf] %v1303
          %1368 = vst [vmem:[%s261 + $0x20] sm:$0xf] %v1304
          %1369 = vst [vmem:[%s261 + $0x24] sm:$0xf] %v1305
          %1370 = vst [vmem:[%s261 + $0x28] sm:$0xf] %v1306
          %1371 = vst [vmem:[%s261 + $0x2c] sm:$0xf] %v1307
          %1372 = vst [vmem:[%s261 + $0x30] sm:$0xf] %v1308
          %1373 = vst [vmem:[%s261 + $0x34] sm:$0xf] %v1309
          %1374 = vst [vmem:[%s261 + $0x38] sm:$0xf] %v1310
          %1375 = vst [vmem:[%s261 + $0x3c] sm:$0xf] %v1311
          %1376 = vst [vmem:[%s261 + $0x40] sm:$0xf] %v1312
          %1377 = vst [vmem:[%s261 + $0x44] sm:$0xf] %v1313
          %1378 = vst [vmem:[%s261 + $0x48] sm:$0xf] %v1314
          %1379 = vst [vmem:[%s261 + $0x4c] sm:$0xf] %v1315
          %1380 = vst [vmem:[%s261 + $0x50] sm:$0xf] %v1316
          %1381 = vst [vmem:[%s261 + $0x54] sm:$0xf] %v1317
          %1382 = vst [vmem:[%s261 + $0x58] sm:$0xf] %v1318
          %1383 = vst [vmem:[%s261 + $0x5c] sm:$0xf] %v1319
          %1384 = vst [vmem:[%s261 + $0x60] sm:$0xf] %v1320
          %1385 = vst [vmem:[%s261 + $0x64] sm:$0xf] %v1321
          %1386 = vst [vmem:[%s261 + $0x68] sm:$0xf] %v1322
          %1387 = vst [vmem:[%s261 + $0x6c] sm:$0xf] %v1323
          %1388 = vst [vmem:[%s261 + $0x70] sm:$0xf] %v1324
          %1389 = vst [vmem:[%s261 + $0x74] sm:$0xf] %v1325
          %1390 = vst [vmem:[%s261 + $0x78] sm:$0xf] %v1326
          %1391 = vst [vmem:[%s261 + $0x7c] sm:$0xf] %v1327
        $region56: #{tpu_custom_call.1} parent=35 // pred_fallthru
          _
        %s1392 = sand.u32 %s133, 1
        %s1393 = scalar_lea.sflag [#allocation5], %s1392
        %s1394 = sand.u32 %s133, 1
        %s1395 = smul.addr %s1394, 128
        %s1396 = scalar_lea.vmem [#allocation9], %s1395
        // Predicated region
        $region57: #{tpu_custom_call.1} parent=35 // pred_check
          %p1397 = pneg %p143
        $region58: #{tpu_custom_call.1} parent=35 // pred_check_branch
          %1399 = sbr.rel (%p1397) target = $region60
        $region59: #{tpu_custom_call.1} parent=35 // pred_region
          %s1400 = smul.u32 32, %s26
          %s1402 = ssub.s32 2048, 2048
          %1403 = vsyncadd %s1393, %s1402
          %s1404 = smul.addr %s1400, 64
          %s1405 = scalar_lea.hbm %s4, %s1404
          %s1406 = sshll.u32 %s1396, 4
          %s1407 = int_to_ptr.vmem [resolvable:$true] %s1406
          %1412 = dma.vmem_to_hbm [thread:$0]  %s1407, 2048, %s1405, %s1393, 64, 64, 4
        $region60: #{tpu_custom_call.1} parent=35 // pred_fallthru
          _
      $region36: #{tpu_custom_call.1} parent=5 // pred_fallthru
        _
      %p1413 = scmp.le.s32.totalorder 2, %s17
      // Predicated region
      $region61: #{tpu_custom_call.1} parent=5 // pred_check
        %p1414 = pneg %p1413
      $region62: #{tpu_custom_call.1} parent=5 // pred_check_branch
        %1416 = sbr.rel (%p1414) target = $region64
      $region63: #{tpu_custom_call.1} parent=5 // pred_region
        %s1417 = ssub.s32 %s17, 2
        // Predicated region
        $region65: #{tpu_custom_call.1} parent=63 // pred_check
          %p1418 = pneg %p149
        $region66: #{tpu_custom_call.1} parent=63 // pred_check_branch
          %1420 = sbr.rel (%p1418) target = $region68
        $region67: #{tpu_custom_call.1} parent=63 // pred_region
          %s1421 = sand.u32 %s134, 1
          %s1422 = scalar_lea.sflag [#allocation5], %s1421
          %s1423 = sand.u32 %s134, 1
          %s1424 = smul.addr %s1423, 128
          %s1425 = scalar_lea.vmem [#allocation9], %s1424
          %1426 = dma.done %s1422, 2048
        $region68: #{tpu_custom_call.1} parent=63 // pred_fallthru
          _
      $region64: #{tpu_custom_call.1} parent=5 // pred_fallthru
        _
    $region6: #{tpu_custom_call.1} parent=1 // loop_footer
      %s21 = sadd.s32 1, %s17
    $region7: #{tpu_custom_call.1} parent=1 // loop_footer_branch
      %16 = sbr.rel target = $region3
    $region8: #{tpu_custom_call.1} parent=1 // loop_exit
      _
    %1427 = vsyncpa [#allocation4], 1
    %s1428 = scalar_lea.sflag [#allocation4], 1
    %1429 = vsyncpa %s1428, 1
    %1430 = vsyncpa [#allocation7], 1
    %1431 = vsyncpa [#allocation5], 1
    %s1432 = scalar_lea.sflag [#allocation5], 1
    %1433 = vsyncpa %s1432, 1

</llo_original>
